<compile_context>
chip_gen: v7x
topology: tpu7x:2x2x1
jax: 0.10.0
libtpu: 0.0.40
codegen_flags: <defaults>
</compile_context>

<pallas_src>
import jax
import jax.numpy as jnp
from jax.experimental import pallas as pl
from jax.experimental.pallas import tpu as pltpu

D_FEAT = 180          # first Linear input size is hard-coded to 180 in the module
HIDDEN = 128          # hidden size for the small self-test (module default is 512)
BLOCK_B = 2048        # default batch tile (rows per grid step)


def _round_up(x, m):
    return (x + m - 1) // m * m


def mlp_kernel(x_ref, w0_ref, b0_ref, w1_ref, b1_ref, w2_ref, b2_ref,
               wo_ref, bo_ref, out_ref):
    """One batch tile: 3x (Linear+ReLU) + Linear(hidden->1), fully fused."""
    cd = w0_ref.dtype  # MXU compute dtype (float32 or bfloat16)

    # fc_0 + relu_0   (drop_* with p=0.0 are identities and are elided)
    h = jnp.dot(x_ref[...], w0_ref[...], preferred_element_type=jnp.float32)
    h = jnp.maximum(h + b0_ref[...], 0.0)

    # fc_1 + relu_1
    h = jnp.dot(h.astype(cd), w1_ref[...], preferred_element_type=jnp.float32)
    h = jnp.maximum(h + b1_ref[...], 0.0)

    # fc_2 + relu_2
    h = jnp.dot(h.astype(cd), w2_ref[...], preferred_element_type=jnp.float32)
    h = jnp.maximum(h + b2_ref[...], 0.0)

    # fc_out: (1,H) . (TB,H)^T -> (1,TB): lane-dense row, no width-1 MXU output.
    o = jnp.einsum("oh,bh->ob", wo_ref[...], h.astype(cd),
                   preferred_element_type=jnp.float32)
    out_ref[...] = o + bo_ref[0, 0]


def mlp_forward(x, params, *, block_b=BLOCK_B, compute_dtype=jnp.float32):
    """x: (N, 180). Returns (N,) float32 (matches MLP.forward(x).squeeze())."""
    w0, b0, w1, b1, w2, b2, wo, bo = params
    n, d_feat = x.shape

    # Pick the batch tile: one tile (rounded to a sublane multiple) for small
    # batches, otherwise `block_b` rows lane-aligned for the dense output store.
    if _round_up(n, 8) <= block_b:
        bb = _round_up(n, 8)
    else:
        bb = _round_up(block_b, 128)
    n_pad = _round_up(n, bb)
    if n_pad != n:
        x = jnp.pad(x, ((0, n_pad - n), (0, 0)))
    num_tiles = n_pad // bb

    # Optional bf16 compute (halves x HBM traffic; f32 accumulation/bias/ReLU).
    xc = x.astype(compute_dtype)
    w0c, w1c, w2c, woc = (w.astype(compute_dtype) for w in (w0, w1, w2, wo))

    # Weights/biases: constant-index full blocks -> VMEM-resident across grid.
    resident = lambda shape: pl.BlockSpec(shape, lambda i: (0, 0))

    out = pl.pallas_call(
        mlp_kernel,
        out_shape=jax.ShapeDtypeStruct((1, n_pad), jnp.float32),
        grid=(num_tiles,),
        in_specs=[
            pl.BlockSpec((bb, d_feat), lambda i: (i, 0)),       # x batch tile
            resident(w0c.shape), resident(b0.shape),
            resident(w1c.shape), resident(b1.shape),
            resident(w2c.shape), resident(b2.shape),
            resident(woc.shape),
            pl.BlockSpec(memory_space=pltpu.MemorySpace.SMEM),  # scalar out bias
        ],
        out_specs=pl.BlockSpec((1, bb), lambda i: (0, i)),      # lane-dense row
        compiler_params=pltpu.CompilerParams(
            dimension_semantics=("parallel",),
            vmem_limit_bytes=48 * 1024 * 1024),
    )(xc, w0c, b0, w1c, b1, w2c, b2, woc, bo)
    return out[0, :n]


def init_params(key, hidden=HIDDEN, d_feat=D_FEAT):
    """Deterministic init matching torch.nn.Linear's U(-1/sqrt(fan_in), +).

    Hidden weights are stored pre-transposed as (in, out) = W^T so the kernel
    does row-major MXU matmuls; the output weight is kept as a (1, hidden) row
    and its bias as a (1, 1) scalar (placed in SMEM by the kernel).
    """
    ks = jax.random.split(key, 8)

    def lin_t(kw, kb, fan_in, fan_out):
        bound = 1.0 / jnp.sqrt(fan_in)
        w = jax.random.uniform(kw, (fan_in, fan_out), jnp.float32, -bound, bound)
        b = jax.random.uniform(kb, (1, fan_out), jnp.float32, -bound, bound)
        return w, b

    w0, b0 = lin_t(ks[0], ks[1], d_feat, hidden)
    w1, b1 = lin_t(ks[2], ks[3], hidden, hidden)
    w2, b2 = lin_t(ks[4], ks[5], hidden, hidden)
    wo_t, bo = lin_t(ks[6], ks[7], hidden, 1)
    wo = wo_t.T                     # (1, hidden): same layout as torch fc_out.weight
    bo = bo.reshape(1, 1)
    return (w0, b0, w1, b1, w2, b2, wo, bo)


def mlp_reference(x, params):
    w0, b0, w1, b1, w2, b2, wo, bo = params
    h = jnp.maximum(x @ w0 + b0, 0.0)
    h = jnp.maximum(h @ w1 + b1, 0.0)
    h = jnp.maximum(h @ w2 + b2, 0.0)
    return (h @ wo.T + bo).squeeze(-1)


if __name__ == "__main__":
    key = jax.random.PRNGKey(0)
    kx, kp = jax.random.split(key)
    params = init_params(kp, hidden=HIDDEN)

    n = 300
    x = jax.random.normal(kx, (n, D_FEAT), jnp.float32)
    ref = mlp_reference(x, params)

    # Default path: small batch -> single tile (rounded to a sublane multiple).
    out = jax.block_until_ready(mlp_forward(x, params))
    assert out.shape == (n,)
    assert jnp.allclose(out, ref, atol=2e-4, rtol=2e-4)

    # Multi-tile path: batch NOT divisible by the tile -> padding + a 3-step
    # "parallel" grid (3 tiles of 128 rows, 300 -> 384 padded rows).
    out_tiled = jax.block_until_ready(mlp_forward(x, params, block_b=128))
    assert out_tiled.shape == (n,)
    assert jnp.allclose(out_tiled, ref, atol=2e-4, rtol=2e-4)

    # Tiny batch -> single-tile path with a non-lane-aligned output row.
    out_small = jax.block_until_ready(mlp_forward(x[:16], params))
    assert out_small.shape == (16,)
    assert jnp.allclose(out_small, ref[:16], atol=2e-4, rtol=2e-4)

    # Optional bf16 compute path (halves x HBM traffic; looser tolerance).
    out_bf16 = jax.block_until_ready(
        mlp_forward(x, params, compute_dtype=jnp.bfloat16))
    assert out_bf16.shape == (n,)
    assert jnp.allclose(out_bf16, ref, atol=7.5e-2, rtol=7.5e-2)

    print("KERNEL_OK")
</pallas_src>

<mosaic_0001>
module attributes {stable_mosaic.version = 11 : i64} {
  func.func @mlp_kernel(%arg0: i32, %arg1: memref<304x180xf32, #tpu.memory_space<vmem>>, %arg2: memref<180x128xf32, #tpu.memory_space<vmem>>, %arg3: memref<1x128xf32, #tpu.memory_space<vmem>>, %arg4: memref<128x128xf32, #tpu.memory_space<vmem>>, %arg5: memref<1x128xf32, #tpu.memory_space<vmem>>, %arg6: memref<128x128xf32, #tpu.memory_space<vmem>>, %arg7: memref<1x128xf32, #tpu.memory_space<vmem>>, %arg8: memref<1x128xf32, #tpu.memory_space<vmem>>, %arg9: memref<1x1xf32, #tpu.memory_space<smem>>, %arg10: memref<1x304xf32, #tpu.memory_space<vmem>>) attributes {dimension_semantics = [#tpu.dimension_semantics<parallel>], iteration_bounds = array<i64: 1>, scalar_prefetch = 0 : i64, scratch_operands = 0 : i64, tpu.core_type = #tpu.core_type<tc>, window_params = [{transform_indices = @transform_0, window_bounds = array<i64: 304, 180>}, {pipeline_mode = #tpu.pipeline_mode<synchronous>, transform_indices = @transform_1, window_bounds = array<i64: 180, 128>}, {pipeline_mode = #tpu.pipeline_mode<synchronous>, transform_indices = @transform_2, window_bounds = array<i64: 1, 128>}, {pipeline_mode = #tpu.pipeline_mode<synchronous>, transform_indices = @transform_3, window_bounds = array<i64: 128, 128>}, {pipeline_mode = #tpu.pipeline_mode<synchronous>, transform_indices = @transform_4, window_bounds = array<i64: 1, 128>}, {pipeline_mode = #tpu.pipeline_mode<synchronous>, transform_indices = @transform_5, window_bounds = array<i64: 128, 128>}, {pipeline_mode = #tpu.pipeline_mode<synchronous>, transform_indices = @transform_6, window_bounds = array<i64: 1, 128>}, {pipeline_mode = #tpu.pipeline_mode<synchronous>, transform_indices = @transform_7, window_bounds = array<i64: 1, 128>}, {transform_indices = @transform_8, window_bounds = array<i64: 1, 1>}, {transform_indices = @transform_9, window_bounds = array<i64: 1, 304>}]} {
    %c0 = arith.constant 0 : index
    %c0_0 = arith.constant 0 : index
    %0 = vector.load %arg1[%c0, %c0_0] : memref<304x180xf32, #tpu.memory_space<vmem>>, vector<304x180xf32>
    %c0_1 = arith.constant 0 : index
    %c0_2 = arith.constant 0 : index
    %1 = vector.load %arg2[%c0_1, %c0_2] : memref<180x128xf32, #tpu.memory_space<vmem>>, vector<180x128xf32>
    %cst = arith.constant dense<0.000000e+00> : vector<304x128xf32>
    %2 = tpu.matmul %0, %1, %cst {dimension_numbers = #tpu.dot_dimension_numbers<[1], [0], [0], [1], [0, 0, 1, 1], [], []>} : vector<304x180xf32>, vector<180x128xf32>, vector<304x128xf32> -> vector<304x128xf32>
    %c0_3 = arith.constant 0 : index
    %c0_4 = arith.constant 0 : index
    %3 = vector.load %arg3[%c0_3, %c0_4] : memref<1x128xf32, #tpu.memory_space<vmem>>, vector<1x128xf32>
    %4 = vector.broadcast %3 : vector<1x128xf32> to vector<304x128xf32>
    %5 = arith.addf %2, %4 : vector<304x128xf32>
    %cst_5 = arith.constant 0.000000e+00 : f32
    %6 = vector.broadcast %cst_5 : f32 to vector<304x128xf32>
    %7 = arith.maximumf %5, %6 : vector<304x128xf32>
    %c0_6 = arith.constant 0 : index
    %c0_7 = arith.constant 0 : index
    %8 = vector.load %arg4[%c0_6, %c0_7] : memref<128x128xf32, #tpu.memory_space<vmem>>, vector<128x128xf32>
    %cst_8 = arith.constant dense<0.000000e+00> : vector<304x128xf32>
    %9 = tpu.matmul %7, %8, %cst_8 {dimension_numbers = #tpu.dot_dimension_numbers<[1], [0], [0], [1], [0, 0, 1, 1], [], []>} : vector<304x128xf32>, vector<128x128xf32>, vector<304x128xf32> -> vector<304x128xf32>
    %c0_9 = arith.constant 0 : index
    %c0_10 = arith.constant 0 : index
    %10 = vector.load %arg5[%c0_9, %c0_10] : memref<1x128xf32, #tpu.memory_space<vmem>>, vector<1x128xf32>
    %11 = vector.broadcast %10 : vector<1x128xf32> to vector<304x128xf32>
    %12 = arith.addf %9, %11 : vector<304x128xf32>
    %cst_11 = arith.constant 0.000000e+00 : f32
    %13 = vector.broadcast %cst_11 : f32 to vector<304x128xf32>
    %14 = arith.maximumf %12, %13 : vector<304x128xf32>
    %c0_12 = arith.constant 0 : index
    %c0_13 = arith.constant 0 : index
    %15 = vector.load %arg6[%c0_12, %c0_13] : memref<128x128xf32, #tpu.memory_space<vmem>>, vector<128x128xf32>
    %cst_14 = arith.constant dense<0.000000e+00> : vector<304x128xf32>
    %16 = tpu.matmul %14, %15, %cst_14 {dimension_numbers = #tpu.dot_dimension_numbers<[1], [0], [0], [1], [0, 0, 1, 1], [], []>} : vector<304x128xf32>, vector<128x128xf32>, vector<304x128xf32> -> vector<304x128xf32>
    %c0_15 = arith.constant 0 : index
    %c0_16 = arith.constant 0 : index
    %17 = vector.load %arg7[%c0_15, %c0_16] : memref<1x128xf32, #tpu.memory_space<vmem>>, vector<1x128xf32>
    %18 = vector.broadcast %17 : vector<1x128xf32> to vector<304x128xf32>
    %19 = arith.addf %16, %18 : vector<304x128xf32>
    %cst_17 = arith.constant 0.000000e+00 : f32
    %20 = vector.broadcast %cst_17 : f32 to vector<304x128xf32>
    %21 = arith.maximumf %19, %20 : vector<304x128xf32>
    %c0_18 = arith.constant 0 : index
    %c0_19 = arith.constant 0 : index
    %22 = vector.load %arg8[%c0_18, %c0_19] : memref<1x128xf32, #tpu.memory_space<vmem>>, vector<1x128xf32>
    "tpu.trace_start"() <{level = 10 : i32, message = "oh,bh->ob"}> : () -> ()
    %cst_20 = arith.constant dense<0.000000e+00> : vector<1x304xf32>
    %23 = tpu.matmul %22, %21, %cst_20 {dimension_numbers = #tpu.dot_dimension_numbers<[1], [1], [0], [0], [0, 0, 1, 0], [], []>} : vector<1x128xf32>, vector<304x128xf32>, vector<1x304xf32> -> vector<1x304xf32>
    "tpu.trace_stop"() : () -> ()
    %c0_21 = arith.constant 0 : index
    %c0_22 = arith.constant 0 : index
    %24 = memref.load %arg9[%c0_21, %c0_22] : memref<1x1xf32, #tpu.memory_space<smem>>
    %25 = vector.broadcast %24 : f32 to vector<1x304xf32>
    %26 = arith.addf %23, %25 : vector<1x304xf32>
    %c0_23 = arith.constant 0 : index
    %c0_24 = arith.constant 0 : index
    %27 = vector.load %arg10[%c0_23, %c0_24] : memref<1x304xf32, #tpu.memory_space<vmem>>, vector<1x304xf32>
    tpu.vector_store %arg10[%c0_23, %c0_24], %26 {strides = array<i32>} : memref<1x304xf32, #tpu.memory_space<vmem>>, vector<1x304xf32>,
    return
  }
  func.func @transform_0(%arg0: i32) -> (i32, i32) {
    %c0_i32 = arith.constant 0 : i32
    %c0_i32_0 = arith.constant 0 : i32
    return %arg0, %c0_i32 : i32, i32
  }
  func.func @transform_1(%arg0: i32) -> (i32, i32) {
    %c0_i32 = arith.constant 0 : i32
    %c0_i32_0 = arith.constant 0 : i32
    %c0_i32_1 = arith.constant 0 : i32
    return %c0_i32, %c0_i32_0 : i32, i32
  }
  func.func @transform_2(%arg0: i32) -> (i32, i32) {
    %c0_i32 = arith.constant 0 : i32
    %c0_i32_0 = arith.constant 0 : i32
    %c0_i32_1 = arith.constant 0 : i32
    return %c0_i32, %c0_i32_0 : i32, i32
  }
  func.func @transform_3(%arg0: i32) -> (i32, i32) {
    %c0_i32 = arith.constant 0 : i32
    %c0_i32_0 = arith.constant 0 : i32
    %c0_i32_1 = arith.constant 0 : i32
    return %c0_i32, %c0_i32_0 : i32, i32
  }
  func.func @transform_4(%arg0: i32) -> (i32, i32) {
    %c0_i32 = arith.constant 0 : i32
    %c0_i32_0 = arith.constant 0 : i32
    %c0_i32_1 = arith.constant 0 : i32
    return %c0_i32, %c0_i32_0 : i32, i32
  }
  func.func @transform_5(%arg0: i32) -> (i32, i32) {
    %c0_i32 = arith.constant 0 : i32
    %c0_i32_0 = arith.constant 0 : i32
    %c0_i32_1 = arith.constant 0 : i32
    return %c0_i32, %c0_i32_0 : i32, i32
  }
  func.func @transform_6(%arg0: i32) -> (i32, i32) {
    %c0_i32 = arith.constant 0 : i32
    %c0_i32_0 = arith.constant 0 : i32
    %c0_i32_1 = arith.constant 0 : i32
    return %c0_i32, %c0_i32_0 : i32, i32
  }
  func.func @transform_7(%arg0: i32) -> (i32, i32) {
    %c0_i32 = arith.constant 0 : i32
    %c0_i32_0 = arith.constant 0 : i32
    %c0_i32_1 = arith.constant 0 : i32
    return %c0_i32, %c0_i32_0 : i32, i32
  }
  func.func @transform_8(%arg0: i32) -> (i32, i32) {
    %c0_i32 = arith.constant 0 : i32
    %c0_i32_0 = arith.constant 0 : i32
    %c0_i32_1 = arith.constant 0 : i32
    return %c0_i32, %c0_i32_0 : i32, i32
  }
  func.func @transform_9(%arg0: i32) -> (i32, i32) {
    %c0_i32 = arith.constant 0 : i32
    %c0_i32_0 = arith.constant 0 : i32
    return %c0_i32, %arg0 : i32, i32
  }
}

</mosaic_0001>

<llo_original>
// kernel: tpu_custom_call.1
$region0: #{tpu_custom_call.1}
  #allocation0 [shape = 'u32[]', space=smem, size = 0x4, offset = 0x4, fixed_abs, tag = 'smem constant byte address 0x4 - core index']
  #allocation1 [shape = 'u32[144,128]{1,0:T(1,128)}', space=vmem, size = 0x12000, scoped, tag = 'internal scratch']
  #allocation2 [shape = 'f32[1,1]{1,0:T(1,128)S(6)}', space=smem, size = 0x200, scoped, tag = 'scoped memory for tpu_custom_call.1']
  %s0 = inlined_call_operand.vmem [shape: f32[304,180], index: 0, kind: input, shape index: {}]
  %s1 = inlined_call_operand.vmem [shape: f32[180,128], index: 1, kind: input, shape index: {}]
  %s2 = inlined_call_operand.vmem [shape: f32[1,128], index: 2, kind: input, shape index: {}]
  %s3 = inlined_call_operand.vmem [shape: f32[128,128], index: 3, kind: input, shape index: {}]
  %s4 = inlined_call_operand.vmem [shape: f32[1,128], index: 4, kind: input, shape index: {}]
  %s5 = inlined_call_operand.vmem [shape: f32[128,128], index: 5, kind: input, shape index: {}]
  %s6 = inlined_call_operand.vmem [shape: f32[1,128], index: 6, kind: input, shape index: {}]
  %s7 = inlined_call_operand.vmem [shape: f32[1,128], index: 7, kind: input, shape index: {}]
  %s8 = inlined_call_operand.<no memory space> [shape: f32[1,1], index: 8, kind: input, shape index: {}]
  %s9 = inlined_call_operand.hbm [shape: f32[1,304], index: 9, kind: output, shape index: {}]
  %s10 = sld [smem:[#allocation0]]
  $region46: #{tpu_custom_call.1} parent=0
    _
  %s12 = ssub.s32 1, %s10
  %s13 = scalar_select 0, %s12, %s10
  %14 = sst [smem:[#allocation2]] %s8
  $region1: #{tpu_custom_call.1} parent=0
    #allocation3 [shape = 'u8[1536]{0}', space=vmem, size = 0x800, scoped, tag = 'output window, operand 0, single buffered']
    #allocation4 [shape = 's32[1]{0}', space=sflag, size = 0x4, scoped, tag = 'scoped memory for tpu_custom_call.1']
    %15 = vsyncpa [#allocation4], 0
    // Predicated region
    $region2: #{tpu_custom_call.1} parent=1 // pred_check
      _
    $region3: #{tpu_custom_call.1} parent=1 // pred_check_branch
      %17 = sbr.rel (0) target = $region5
    $region4: #{tpu_custom_call.1} parent=1 // pred_region
      _
    $region5: #{tpu_custom_call.1} parent=1 // pred_fallthru
      _
    // Predicated region
    $region6: #{tpu_custom_call.1} parent=1 // pred_check
      _
    $region7: #{tpu_custom_call.1} parent=1 // pred_check_branch
      %19 = sbr.rel (0) target = $region9
    $region8: #{tpu_custom_call.1} parent=1 // pred_region
      _
    $region9: #{tpu_custom_call.1} parent=1 // pred_fallthru
      _
    // Predicated region
    $region10: #{tpu_custom_call.1} parent=1 // pred_check
      _
    $region11: #{tpu_custom_call.1} parent=1 // pred_check_branch
      %21 = sbr.rel (0) target = $region13
    $region12: #{tpu_custom_call.1} parent=1 // pred_region
      _
    $region13: #{tpu_custom_call.1} parent=1 // pred_fallthru
      _
    // Predicated region
    $region14: #{tpu_custom_call.1} parent=1 // pred_check
      _
    $region15: #{tpu_custom_call.1} parent=1 // pred_check_branch
      %23 = sbr.rel (0) target = $region17
    $region16: #{tpu_custom_call.1} parent=1 // pred_region
      _
    $region17: #{tpu_custom_call.1} parent=1 // pred_fallthru
      _
    // Predicated region
    $region18: #{tpu_custom_call.1} parent=1 // pred_check
      _
    $region19: #{tpu_custom_call.1} parent=1 // pred_check_branch
      %25 = sbr.rel (0) target = $region21
    $region20: #{tpu_custom_call.1} parent=1 // pred_region
      _
    $region21: #{tpu_custom_call.1} parent=1 // pred_fallthru
      _
    // Predicated region
    $region22: #{tpu_custom_call.1} parent=1 // pred_check
      _
    $region23: #{tpu_custom_call.1} parent=1 // pred_check_branch
      %27 = sbr.rel (0) target = $region25
    $region24: #{tpu_custom_call.1} parent=1 // pred_region
      _
    $region25: #{tpu_custom_call.1} parent=1 // pred_fallthru
      _
    // Predicated region
    $region26: #{tpu_custom_call.1} parent=1 // pred_check
      _
    $region27: #{tpu_custom_call.1} parent=1 // pred_check_branch
      %29 = sbr.rel (0) target = $region29
    $region28: #{tpu_custom_call.1} parent=1 // pred_region
      _
    $region29: #{tpu_custom_call.1} parent=1 // pred_fallthru
      _
    // Predicated region
    $region30: #{tpu_custom_call.1} parent=1 // pred_check
      _
    $region31: #{tpu_custom_call.1} parent=1 // pred_check_branch
      %31 = sbr.rel (0) target = $region33
    $region32: #{tpu_custom_call.1} parent=1 // pred_region
      _
    $region33: #{tpu_custom_call.1} parent=1 // pred_fallthru
      _
    // Predicated region
    $region34: #{tpu_custom_call.1} parent=1 // pred_check
      _
    $region35: #{tpu_custom_call.1} parent=1 // pred_check_branch
      %33 = sbr.rel (0) target = $region37
    $region36: #{tpu_custom_call.1} parent=1 // pred_region
      _
    $region37: #{tpu_custom_call.1} parent=1 // pred_fallthru
      _
    %v34 = vld [vmem:[%s0] sm:$0xff]
    %v35 = vld [vmem:[%s0 + $0x8] sm:$0xff]
    %v36 = vld [vmem:[%s0 + $0x10] sm:$0xff]
    %v37 = vld [vmem:[%s0 + $0x18] sm:$0xff]
    %v38 = vld [vmem:[%s0 + $0x20] sm:$0xff]
    %v39 = vld [vmem:[%s0 + $0x28] sm:$0xff]
    %v40 = vld [vmem:[%s0 + $0x30] sm:$0xff]
    %v41 = vld [vmem:[%s0 + $0x38] sm:$0xff]
    %v42 = vld [vmem:[%s0 + $0x40] sm:$0xff]
    %v43 = vld [vmem:[%s0 + $0x48] sm:$0xff]
    %v44 = vld [vmem:[%s0 + $0x50] sm:$0xff]
    %v45 = vld [vmem:[%s0 + $0x58] sm:$0xff]
    %v46 = vld [vmem:[%s0 + $0x60] sm:$0xff]
    %v47 = vld [vmem:[%s0 + $0x68] sm:$0xff]
    %v48 = vld [vmem:[%s0 + $0x70] sm:$0xff]
    %v49 = vld [vmem:[%s0 + $0x78] sm:$0xff]
    %v50 = vld [vmem:[%s0 + $0x80] sm:$0xff]
    %v51 = vld [vmem:[%s0 + $0x88] sm:$0xff]
    %v52 = vld [vmem:[%s0 + $0x90] sm:$0xff]
    %v53 = vld [vmem:[%s0 + $0x98] sm:$0xff]
    %v54 = vld [vmem:[%s0 + $0xa0] sm:$0xff]
    %v55 = vld [vmem:[%s0 + $0xa8] sm:$0xff]
    %v56 = vld [vmem:[%s0 + $0xb0] sm:$0xff]
    %v57 = vld [vmem:[%s0 + $0xb8] sm:$0xff]
    %v58 = vld [vmem:[%s0 + $0xc0] sm:$0xff]
    %v59 = vld [vmem:[%s0 + $0xc8] sm:$0xff]
    %v60 = vld [vmem:[%s0 + $0xd0] sm:$0xff]
    %v61 = vld [vmem:[%s0 + $0xd8] sm:$0xff]
    %v62 = vld [vmem:[%s0 + $0xe0] sm:$0xff]
    %v63 = vld [vmem:[%s0 + $0xe8] sm:$0xff]
    %v64 = vld [vmem:[%s0 + $0xf0] sm:$0xff]
    %v65 = vld [vmem:[%s0 + $0xf8] sm:$0xff]
    %v66 = vld [vmem:[%s0 + $0x100] sm:$0xff]
    %v67 = vld [vmem:[%s0 + $0x108] sm:$0xff]
    %v68 = vld [vmem:[%s0 + $0x110] sm:$0xff]
    %v69 = vld [vmem:[%s0 + $0x118] sm:$0xff]
    %v70 = vld [vmem:[%s0 + $0x120] sm:$0xff]
    %v71 = vld [vmem:[%s0 + $0x128] sm:$0xff]
    %v72 = vld [vmem:[%s0 + $0x130] sm:$0xff]
    %v73 = vld [vmem:[%s0 + $0x138] sm:$0xff]
    %v74 = vld [vmem:[%s0 + $0x140] sm:$0xff]
    %v75 = vld [vmem:[%s0 + $0x148] sm:$0xff]
    %v76 = vld [vmem:[%s0 + $0x150] sm:$0xff]
    %v77 = vld [vmem:[%s0 + $0x158] sm:$0xff]
    %v78 = vld [vmem:[%s0 + $0x160] sm:$0xff]
    %v79 = vld [vmem:[%s0 + $0x168] sm:$0xff]
    %v80 = vld [vmem:[%s0 + $0x170] sm:$0xff]
    %v81 = vld [vmem:[%s0 + $0x178] sm:$0xff]
    %v82 = vld [vmem:[%s0 + $0x180] sm:$0xff]
    %v83 = vld [vmem:[%s0 + $0x188] sm:$0xff]
    %v84 = vld [vmem:[%s0 + $0x190] sm:$0xff]
    %v85 = vld [vmem:[%s0 + $0x198] sm:$0xff]
    %v86 = vld [vmem:[%s0 + $0x1a0] sm:$0xff]
    %v87 = vld [vmem:[%s0 + $0x1a8] sm:$0xff]
    %v88 = vld [vmem:[%s0 + $0x1b0] sm:$0xff]
    %v89 = vld [vmem:[%s0 + $0x1b8] sm:$0xff]
    %v90 = vld [vmem:[%s0 + $0x1c0] sm:$0xff]
    %v91 = vld [vmem:[%s0 + $0x1c8] sm:$0xff]
    %v92 = vld [vmem:[%s0 + $0x1d0] sm:$0xff]
    %v93 = vld [vmem:[%s0 + $0x1d8] sm:$0xff]
    %v94 = vld [vmem:[%s0 + $0x1e0] sm:$0xff]
    %v95 = vld [vmem:[%s0 + $0x1e8] sm:$0xff]
    %v96 = vld [vmem:[%s0 + $0x1f0] sm:$0xff]
    %v97 = vld [vmem:[%s0 + $0x1f8] sm:$0xff]
    %v98 = vld [vmem:[%s0 + $0x200] sm:$0xff]
    %v99 = vld [vmem:[%s0 + $0x208] sm:$0xff]
    %v100 = vld [vmem:[%s0 + $0x210] sm:$0xff]
    %v101 = vld [vmem:[%s0 + $0x218] sm:$0xff]
    %v102 = vld [vmem:[%s0 + $0x220] sm:$0xff]
    %v103 = vld [vmem:[%s0 + $0x228] sm:$0xff]
    %v104 = vld [vmem:[%s0 + $0x230] sm:$0xff]
    %v105 = vld [vmem:[%s0 + $0x238] sm:$0xff]
    %v106 = vld [vmem:[%s0 + $0x240] sm:$0xff]
    %v107 = vld [vmem:[%s0 + $0x248] sm:$0xff]
    %v108 = vld [vmem:[%s0 + $0x250] sm:$0xff]
    %v109 = vld [vmem:[%s0 + $0x258] sm:$0xff]
    %v110 = vld [vmem:[%s1] sm:$0xff]
    %v111 = vld [vmem:[%s1 + $0x8] sm:$0xff]
    %v112 = vld [vmem:[%s1 + $0x10] sm:$0xff]
    %v113 = vld [vmem:[%s1 + $0x18] sm:$0xff]
    %v114 = vld [vmem:[%s1 + $0x20] sm:$0xff]
    %v115 = vld [vmem:[%s1 + $0x28] sm:$0xff]
    %v116 = vld [vmem:[%s1 + $0x30] sm:$0xff]
    %v117 = vld [vmem:[%s1 + $0x38] sm:$0xff]
    %v118 = vld [vmem:[%s1 + $0x40] sm:$0xff]
    %v119 = vld [vmem:[%s1 + $0x48] sm:$0xff]
    %v120 = vld [vmem:[%s1 + $0x50] sm:$0xff]
    %v121 = vld [vmem:[%s1 + $0x58] sm:$0xff]
    %v122 = vld [vmem:[%s1 + $0x60] sm:$0xff]
    %v123 = vld [vmem:[%s1 + $0x68] sm:$0xff]
    %v124 = vld [vmem:[%s1 + $0x70] sm:$0xff]
    %v125 = vld [vmem:[%s1 + $0x78] sm:$0xff]
    %v126 = vld [vmem:[%s1 + $0x80] sm:$0xff]
    %v127 = vld [vmem:[%s1 + $0x88] sm:$0xff]
    %v128 = vld [vmem:[%s1 + $0x90] sm:$0xff]
    %v129 = vld [vmem:[%s1 + $0x98] sm:$0xff]
    %v130 = vld [vmem:[%s1 + $0xa0] sm:$0xff]
    %v131 = vld [vmem:[%s1 + $0xa8] sm:$0xff]
    %v132 = vld [vmem:[%s1 + $0xb0] sm:$0xf]
    %v133 = vld [vmem:[%s2] sm:$0x1]
    %v135 = vlaneseq
    %v136 = vshrl.u32 %v135, 7
    %v137 = vsub.s32 0, %v136
    %v138 = vrot.slane %v133, %v137
    %vm140 = vcmask 424960
    %v142 = vsel %vm140, %v35, 0
    %v145 = vsel %vm140, %v37, 0
    %v148 = vsel %vm140, %v39, 0
    %v151 = vsel %vm140, %v41, 0
    %v154 = vsel %vm140, %v43, 0
    %v157 = vsel %vm140, %v45, 0
    %v160 = vsel %vm140, %v47, 0
    %v163 = vsel %vm140, %v49, 0
    %v166 = vsel %vm140, %v51, 0
    %v169 = vsel %vm140, %v53, 0
    %v172 = vsel %vm140, %v55, 0
    %v175 = vsel %vm140, %v57, 0
    %v178 = vsel %vm140, %v59, 0
    %v181 = vsel %vm140, %v61, 0
    %v184 = vsel %vm140, %v63, 0
    %v187 = vsel %vm140, %v65, 0
    %v190 = vsel %vm140, %v67, 0
    %v193 = vsel %vm140, %v69, 0
    %v196 = vsel %vm140, %v71, 0
    %v199 = vsel %vm140, %v73, 0
    %v202 = vsel %vm140, %v75, 0
    %v205 = vsel %vm140, %v77, 0
    %v208 = vsel %vm140, %v79, 0
    %v211 = vsel %vm140, %v81, 0
    %v214 = vsel %vm140, %v83, 0
    %v217 = vsel %vm140, %v85, 0
    %v220 = vsel %vm140, %v87, 0
    %v223 = vsel %vm140, %v89, 0
    %v226 = vsel %vm140, %v91, 0
    %v229 = vsel %vm140, %v93, 0
    %v232 = vsel %vm140, %v95, 0
    %v235 = vsel %vm140, %v97, 0
    %v238 = vsel %vm140, %v99, 0
    %v241 = vsel %vm140, %v101, 0
    %v244 = vsel %vm140, %v103, 0
    %v247 = vsel %vm140, %v105, 0
    %v250 = vsel %vm140, %v107, 0
    %v253 = vsel %vm140, %v109, 0
    %vm255 = vcmask 1043456
    %v257 = vsel %vm255, %v132, 0
    %259 = vmatprep.subr.mxu0 0.0
    %260 = vmatpush1.msra.mxu0 %v110
    %261 = vmatprep.subr.mxu0 0.0
    %262 = vmatpush1.msra.mxu0 %v111
    %263 = vmatprep.subr.mxu0 0.0
    %264 = vmatpush1.msra.mxu0 %v112
    %265 = vmatprep.subr.mxu0 0.0
    %266 = vmatpush1.msra.mxu0 %v113
    %267 = vmatprep.subr.mxu0 0.0
    %268 = vmatpush1.msra.mxu0 %v114
    %269 = vmatprep.subr.mxu0 0.0
    %270 = vmatpush1.msra.mxu0 %v115
    %271 = vmatprep.subr.mxu0 0.0
    %272 = vmatpush1.msra.mxu0 %v116
    %273 = vmatprep.subr.mxu0 0.0
    %274 = vmatpush1.msra.mxu0 %v117
    %275 = vmatprep.subr.mxu0 0.0
    %276 = vmatpush1.msra.mxu0 %v118
    %277 = vmatprep.subr.mxu0 0.0
    %278 = vmatpush1.msra.mxu0 %v119
    %279 = vmatprep.subr.mxu0 0.0
    %280 = vmatpush1.msra.mxu0 %v120
    %281 = vmatprep.subr.mxu0 0.0
    %282 = vmatpush1.msra.mxu0 %v121
    %283 = vmatprep.subr.mxu0 0.0
    %284 = vmatpush1.msra.mxu0 %v122
    %285 = vmatprep.subr.mxu0 0.0
    %286 = vmatpush1.msra.mxu0 %v123
    %287 = vmatprep.subr.mxu0 0.0
    %288 = vmatpush1.msra.mxu0 %v124
    %289 = vmatprep.subr.mxu0 0.0
    %290 = vmatpush1.msra.mxu0 %v125
    %291 = vmatprep.subr.mxu0 0.0
    %292 = vmatpush1.msra.mxu0 %v126
    %293 = vmatprep.subr.mxu0 0.0
    %294 = vmatpush1.msra.mxu0 %v127
    %295 = vmatprep.subr.mxu0 0.0
    %296 = vmatpush1.msra.mxu0 %v128
    %297 = vmatprep.subr.mxu0 0.0
    %298 = vmatpush1.msra.mxu0 %v129
    %299 = vmatprep.subr.mxu0 0.0
    %300 = vmatpush1.msra.mxu0 %v130
    %301 = vmatprep.subr.mxu0 0.0
    %302 = vmatpush1.msra.mxu0 %v131
    %303 = vmatprep.subr.mxu0 0.0
    %304 = vmatpush1.msra.mxu0 %v257
    %305 = vmatprep.subr.mxu0 0.0
    %306 = vmatpush1.msra.mxu0 0.0
    %307 = vmatprep.subr.mxu0 0.0
    %308 = vmatpush1.msra.mxu0 0.0
    %309 = vmatprep.subr.mxu0 0.0
    %310 = vmatpush1.msra.mxu0 0.0
    %311 = vmatprep.subr.mxu0 0.0
    %312 = vmatpush1.msra.mxu0 0.0
    %313 = vmatprep.subr.mxu0 0.0
    %314 = vmatpush1.msra.mxu0 0.0
    %315 = vmatprep.subr.mxu0 0.0
    %316 = vmatpush1.msra.mxu0 0.0
    %317 = vmatprep.subr.mxu0 0.0
    %318 = vmatpush1.msra.mxu0 0.0
    %319 = vmatprep.subr.mxu0 0.0
    %320 = vmatpush1.msra.mxu0 0.0
    %321 = vmatprep.subr.mxu0 0.0
    %322 = vmatpush1.msra.mxu0 0.0
    %323 = vmatprep.mubr.f32.mxu0 %v142
    %324 = vmatmul.mubr.f32.gmra.mrb[0].mxu0 %v34
    %v325 = vpop.f32.mrb[0].mxu0
    %v326 = vadd.f32 %v138, %v325
    %v327 = vpop.f32.mrb[0].mxu0
    %328 = vmatprep.mubr.f32.mxu0 %v145
    %329 = vmatmul.mubr.f32.gmra.mrb[0].mxu0 %v36
    %v330 = vpop.f32.mrb[0].mxu0
    %v331 = vadd.f32 %v138, %v330
    %v332 = vpop.f32.mrb[0].mxu0
    %333 = vmatprep.mubr.f32.mxu0 %v148
    %334 = vmatmul.mubr.f32.gmra.mrb[0].mxu0 %v38
    %v335 = vpop.f32.mrb[0].mxu0
    %v336 = vadd.f32 %v138, %v335
    %v337 = vpop.f32.mrb[0].mxu0
    %338 = vmatprep.mubr.f32.mxu0 %v151
    %339 = vmatmul.mubr.f32.gmra.mrb[0].mxu0 %v40
    %v340 = vpop.f32.mrb[0].mxu0
    %v341 = vadd.f32 %v138, %v340
    %v342 = vpop.f32.mrb[0].mxu0
    %343 = vmatprep.mubr.f32.mxu0 %v154
    %344 = vmatmul.mubr.f32.gmra.mrb[0].mxu0 %v42
    %v345 = vpop.f32.mrb[0].mxu0
    %v346 = vadd.f32 %v138, %v345
    %v347 = vpop.f32.mrb[0].mxu0
    %348 = vmatprep.mubr.f32.mxu0 %v157
    %349 = vmatmul.mubr.f32.gmra.mrb[0].mxu0 %v44
    %v350 = vpop.f32.mrb[0].mxu0
    %v351 = vadd.f32 %v138, %v350
    %v352 = vpop.f32.mrb[0].mxu0
    %353 = vmatprep.mubr.f32.mxu0 %v160
    %354 = vmatmul.mubr.f32.gmra.mrb[0].mxu0 %v46
    %v355 = vpop.f32.mrb[0].mxu0
    %v356 = vadd.f32 %v138, %v355
    %v357 = vpop.f32.mrb[0].mxu0
    %358 = vmatprep.mubr.f32.mxu0 %v163
    %359 = vmatmul.mubr.f32.gmra.mrb[0].mxu0 %v48
    %v360 = vpop.f32.mrb[0].mxu0
    %v361 = vadd.f32 %v138, %v360
    %v362 = vpop.f32.mrb[0].mxu0
    %363 = vmatprep.mubr.f32.mxu0 %v166
    %364 = vmatmul.mubr.f32.gmra.mrb[0].mxu0 %v50
    %v365 = vpop.f32.mrb[0].mxu0
    %v366 = vadd.f32 %v138, %v365
    %v367 = vpop.f32.mrb[0].mxu0
    %368 = vmatprep.mubr.f32.mxu0 %v169
    %369 = vmatmul.mubr.f32.gmra.mrb[0].mxu0 %v52
    %v370 = vpop.f32.mrb[0].mxu0
    %v371 = vadd.f32 %v138, %v370
    %v372 = vpop.f32.mrb[0].mxu0
    %373 = vmatprep.mubr.f32.mxu0 %v172
    %374 = vmatmul.mubr.f32.gmra.mrb[0].mxu0 %v54
    %v375 = vpop.f32.mrb[0].mxu0
    %v376 = vadd.f32 %v138, %v375
    %v377 = vpop.f32.mrb[0].mxu0
    %378 = vmatprep.mubr.f32.mxu0 %v175
    %379 = vmatmul.mubr.f32.gmra.mrb[0].mxu0 %v56
    %v380 = vpop.f32.mrb[0].mxu0
    %v381 = vadd.f32 %v138, %v380
    %v382 = vpop.f32.mrb[0].mxu0
    %383 = vmatprep.mubr.f32.mxu0 %v178
    %384 = vmatmul.mubr.f32.gmra.mrb[0].mxu0 %v58
    %v385 = vpop.f32.mrb[0].mxu0
    %v386 = vadd.f32 %v138, %v385
    %v387 = vpop.f32.mrb[0].mxu0
    %388 = vmatprep.mubr.f32.mxu0 %v181
    %389 = vmatmul.mubr.f32.gmra.mrb[0].mxu0 %v60
    %v390 = vpop.f32.mrb[0].mxu0
    %v391 = vadd.f32 %v138, %v390
    %v392 = vpop.f32.mrb[0].mxu0
    %393 = vmatprep.mubr.f32.mxu0 %v184
    %394 = vmatmul.mubr.f32.gmra.mrb[0].mxu0 %v62
    %v395 = vpop.f32.mrb[0].mxu0
    %v396 = vadd.f32 %v138, %v395
    %v397 = vpop.f32.mrb[0].mxu0
    %398 = vmatprep.mubr.f32.mxu0 %v187
    %399 = vmatmul.mubr.f32.gmra.mrb[0].mxu0 %v64
    %v400 = vpop.f32.mrb[0].mxu0
    %v401 = vadd.f32 %v138, %v400
    %v402 = vpop.f32.mrb[0].mxu0
    %403 = vmatprep.mubr.f32.mxu0 %v190
    %404 = vmatmul.mubr.f32.gmra.mrb[0].mxu0 %v66
    %v405 = vpop.f32.mrb[0].mxu0
    %v406 = vadd.f32 %v138, %v405
    %v407 = vpop.f32.mrb[0].mxu0
    %408 = vmatprep.mubr.f32.mxu0 %v193
    %409 = vmatmul.mubr.f32.gmra.mrb[0].mxu0 %v68
    %v410 = vpop.f32.mrb[0].mxu0
    %v411 = vadd.f32 %v138, %v410
    %v412 = vpop.f32.mrb[0].mxu0
    %413 = vmatprep.mubr.f32.mxu0 %v196
    %414 = vmatmul.mubr.f32.gmra.mrb[0].mxu0 %v70
    %v415 = vpop.f32.mrb[0].mxu0
    %v416 = vadd.f32 %v138, %v415
    %v417 = vpop.f32.mrb[0].mxu0
    %418 = vmatprep.mubr.f32.mxu0 %v199
    %419 = vmatmul.mubr.f32.gmra.mrb[0].mxu0 %v72
    %v420 = vpop.f32.mrb[0].mxu0
    %v421 = vadd.f32 %v138, %v420
    %v422 = vpop.f32.mrb[0].mxu0
    %423 = vmatprep.mubr.f32.mxu0 %v202
    %424 = vmatmul.mubr.f32.gmra.mrb[0].mxu0 %v74
    %v425 = vpop.f32.mrb[0].mxu0
    %v426 = vadd.f32 %v138, %v425
    %v427 = vpop.f32.mrb[0].mxu0
    %428 = vmatprep.mubr.f32.mxu0 %v205
    %429 = vmatmul.mubr.f32.gmra.mrb[0].mxu0 %v76
    %v430 = vpop.f32.mrb[0].mxu0
    %v431 = vadd.f32 %v138, %v430
    %v432 = vpop.f32.mrb[0].mxu0
    %433 = vmatprep.mubr.f32.mxu0 %v208
    %434 = vmatmul.mubr.f32.gmra.mrb[0].mxu0 %v78
    %v435 = vpop.f32.mrb[0].mxu0
    %v436 = vadd.f32 %v138, %v435
    %v437 = vpop.f32.mrb[0].mxu0
    %438 = vmatprep.mubr.f32.mxu0 %v211
    %439 = vmatmul.mubr.f32.gmra.mrb[0].mxu0 %v80
    %v440 = vpop.f32.mrb[0].mxu0
    %v441 = vadd.f32 %v138, %v440
    %v442 = vpop.f32.mrb[0].mxu0
    %443 = vmatprep.mubr.f32.mxu0 %v214
    %444 = vmatmul.mubr.f32.gmra.mrb[0].mxu0 %v82
    %v445 = vpop.f32.mrb[0].mxu0
    %v446 = vadd.f32 %v138, %v445
    %v447 = vpop.f32.mrb[0].mxu0
    %448 = vmatprep.mubr.f32.mxu0 %v217
    %449 = vmatmul.mubr.f32.gmra.mrb[0].mxu0 %v84
    %v450 = vpop.f32.mrb[0].mxu0
    %v451 = vadd.f32 %v138, %v450
    %v452 = vpop.f32.mrb[0].mxu0
    %453 = vmatprep.mubr.f32.mxu0 %v220
    %454 = vmatmul.mubr.f32.gmra.mrb[0].mxu0 %v86
    %v455 = vpop.f32.mrb[0].mxu0
    %v456 = vadd.f32 %v138, %v455
    %v457 = vpop.f32.mrb[0].mxu0
    %458 = vmatprep.mubr.f32.mxu0 %v223
    %459 = vmatmul.mubr.f32.gmra.mrb[0].mxu0 %v88
    %v460 = vpop.f32.mrb[0].mxu0
    %v461 = vadd.f32 %v138, %v460
    %v462 = vpop.f32.mrb[0].mxu0
    %463 = vmatprep.mubr.f32.mxu0 %v226
    %464 = vmatmul.mubr.f32.gmra.mrb[0].mxu0 %v90
    %v465 = vpop.f32.mrb[0].mxu0
    %v466 = vadd.f32 %v138, %v465
    %v467 = vpop.f32.mrb[0].mxu0
    %468 = vmatprep.mubr.f32.mxu0 %v229
    %469 = vmatmul.mubr.f32.gmra.mrb[0].mxu0 %v92
    %v470 = vpop.f32.mrb[0].mxu0
    %v471 = vadd.f32 %v138, %v470
    %v472 = vpop.f32.mrb[0].mxu0
    %473 = vmatprep.mubr.f32.mxu0 %v232
    %474 = vmatmul.mubr.f32.gmra.mrb[0].mxu0 %v94
    %v475 = vpop.f32.mrb[0].mxu0
    %v476 = vadd.f32 %v138, %v475
    %v477 = vpop.f32.mrb[0].mxu0
    %478 = vmatprep.mubr.f32.mxu0 %v235
    %479 = vmatmul.mubr.f32.gmra.mrb[0].mxu0 %v96
    %v480 = vpop.f32.mrb[0].mxu0
    %v481 = vadd.f32 %v138, %v480
    %v482 = vpop.f32.mrb[0].mxu0
    %483 = vmatprep.mubr.f32.mxu0 %v238
    %484 = vmatmul.mubr.f32.gmra.mrb[0].mxu0 %v98
    %v485 = vpop.f32.mrb[0].mxu0
    %v486 = vadd.f32 %v138, %v485
    %v487 = vpop.f32.mrb[0].mxu0
    %488 = vmatprep.mubr.f32.mxu0 %v241
    %489 = vmatmul.mubr.f32.gmra.mrb[0].mxu0 %v100
    %v490 = vpop.f32.mrb[0].mxu0
    %v491 = vadd.f32 %v138, %v490
    %v492 = vpop.f32.mrb[0].mxu0
    %493 = vmatprep.mubr.f32.mxu0 %v244
    %494 = vmatmul.mubr.f32.gmra.mrb[0].mxu0 %v102
    %v495 = vpop.f32.mrb[0].mxu0
    %v496 = vadd.f32 %v138, %v495
    %v497 = vpop.f32.mrb[0].mxu0
    %498 = vmatprep.mubr.f32.mxu0 %v247
    %499 = vmatmul.mubr.f32.gmra.mrb[0].mxu0 %v104
    %v500 = vpop.f32.mrb[0].mxu0
    %v501 = vadd.f32 %v138, %v500
    %v502 = vpop.f32.mrb[0].mxu0
    %503 = vmatprep.mubr.f32.mxu0 %v250
    %504 = vmatmul.mubr.f32.gmra.mrb[0].mxu0 %v106
    %v505 = vpop.f32.mrb[0].mxu0
    %v506 = vadd.f32 %v138, %v505
    %v507 = vpop.f32.mrb[0].mxu0
    %508 = vmatprep.mubr.f32.mxu0 %v253
    %509 = vmatmul.mubr.f32.gmra.mrb[0].mxu0 %v108
    %v510 = vpop.f32.mrb[0].mxu0
    %v511 = vadd.f32 %v138, %v510
    %v512 = vpop.f32.mrb[0].mxu0
    %513 = vdwg.mxu0
    %v514 = vmax.f32 %v326, 0.0
    %v515 = vmax.f32 %v331, 0.0
    %v516 = vmax.f32 %v336, 0.0
    %v517 = vmax.f32 %v341, 0.0
    %v518 = vmax.f32 %v346, 0.0
    %v519 = vmax.f32 %v351, 0.0
    %v520 = vmax.f32 %v356, 0.0
    %v521 = vmax.f32 %v361, 0.0
    %v522 = vmax.f32 %v366, 0.0
    %v523 = vmax.f32 %v371, 0.0
    %v524 = vmax.f32 %v376, 0.0
    %v525 = vmax.f32 %v381, 0.0
    %v526 = vmax.f32 %v386, 0.0
    %v527 = vmax.f32 %v391, 0.0
    %v528 = vmax.f32 %v396, 0.0
    %v529 = vmax.f32 %v401, 0.0
    %v530 = vmax.f32 %v406, 0.0
    %v531 = vmax.f32 %v411, 0.0
    %v532 = vmax.f32 %v416, 0.0
    %v533 = vmax.f32 %v421, 0.0
    %v534 = vmax.f32 %v426, 0.0
    %v535 = vmax.f32 %v431, 0.0
    %v536 = vmax.f32 %v436, 0.0
    %v537 = vmax.f32 %v441, 0.0
    %v538 = vmax.f32 %v446, 0.0
    %v539 = vmax.f32 %v451, 0.0
    %v540 = vmax.f32 %v456, 0.0
    %v541 = vmax.f32 %v461, 0.0
    %v542 = vmax.f32 %v466, 0.0
    %v543 = vmax.f32 %v471, 0.0
    %v544 = vmax.f32 %v476, 0.0
    %v545 = vmax.f32 %v481, 0.0
    %v546 = vmax.f32 %v486, 0.0
    %v547 = vmax.f32 %v491, 0.0
    %v548 = vmax.f32 %v496, 0.0
    %v549 = vmax.f32 %v501, 0.0
    %v550 = vmax.f32 %v506, 0.0
    %v551 = vmax.f32 %v511, 0.0
    %v552 = vld [vmem:[%s3] sm:$0xff]
    %v553 = vld [vmem:[%s3 + $0x8] sm:$0xff]
    %v554 = vld [vmem:[%s3 + $0x10] sm:$0xff]
    %v555 = vld [vmem:[%s3 + $0x18] sm:$0xff]
    %v556 = vld [vmem:[%s3 + $0x20] sm:$0xff]
    %v557 = vld [vmem:[%s3 + $0x28] sm:$0xff]
    %v558 = vld [vmem:[%s3 + $0x30] sm:$0xff]
    %v559 = vld [vmem:[%s3 + $0x38] sm:$0xff]
    %v560 = vld [vmem:[%s3 + $0x40] sm:$0xff]
    %v561 = vld [vmem:[%s3 + $0x48] sm:$0xff]
    %v562 = vld [vmem:[%s3 + $0x50] sm:$0xff]
    %v563 = vld [vmem:[%s3 + $0x58] sm:$0xff]
    %v564 = vld [vmem:[%s3 + $0x60] sm:$0xff]
    %v565 = vld [vmem:[%s3 + $0x68] sm:$0xff]
    %v566 = vld [vmem:[%s3 + $0x70] sm:$0xff]
    %v567 = vld [vmem:[%s3 + $0x78] sm:$0xff]
    %v568 = vld [vmem:[%s4] sm:$0x1]
    %v570 = vlaneseq
    %v571 = vshrl.u32 %v570, 7
    %v572 = vsub.s32 0, %v571
    %v573 = vrot.slane %v568, %v572
    %575 = vmatprep.subr.mxu0 0.0
    %576 = vmatpush1.msra.mxu0 %v552
    %577 = vmatprep.subr.mxu0 0.0
    %578 = vmatpush1.msra.mxu0 %v553
    %579 = vmatprep.subr.mxu0 0.0
    %580 = vmatpush1.msra.mxu0 %v554
    %581 = vmatprep.subr.mxu0 0.0
    %582 = vmatpush1.msra.mxu0 %v555
    %583 = vmatprep.subr.mxu0 0.0
    %584 = vmatpush1.msra.mxu0 %v556
    %585 = vmatprep.subr.mxu0 0.0
    %586 = vmatpush1.msra.mxu0 %v557
    %587 = vmatprep.subr.mxu0 0.0
    %588 = vmatpush1.msra.mxu0 %v558
    %589 = vmatprep.subr.mxu0 0.0
    %590 = vmatpush1.msra.mxu0 %v559
    %591 = vmatprep.subr.mxu0 0.0
    %592 = vmatpush1.msra.mxu0 %v560
    %593 = vmatprep.subr.mxu0 0.0
    %594 = vmatpush1.msra.mxu0 %v561
    %595 = vmatprep.subr.mxu0 0.0
    %596 = vmatpush1.msra.mxu0 %v562
    %597 = vmatprep.subr.mxu0 0.0
    %598 = vmatpush1.msra.mxu0 %v563
    %599 = vmatprep.subr.mxu0 0.0
    %600 = vmatpush1.msra.mxu0 %v564
    %601 = vmatprep.subr.mxu0 0.0
    %602 = vmatpush1.msra.mxu0 %v565
    %603 = vmatprep.subr.mxu0 0.0
    %604 = vmatpush1.msra.mxu0 %v566
    %605 = vmatprep.subr.mxu0 0.0
    %606 = vmatpush1.msra.mxu0 %v567
    %607 = vmatprep.subr.mxu0 0.0
    %608 = vmatpush1.msra.mxu0 0.0
    %609 = vmatprep.subr.mxu0 0.0
    %610 = vmatpush1.msra.mxu0 0.0
    %611 = vmatprep.subr.mxu0 0.0
    %612 = vmatpush1.msra.mxu0 0.0
    %613 = vmatprep.subr.mxu0 0.0
    %614 = vmatpush1.msra.mxu0 0.0
    %615 = vmatprep.subr.mxu0 0.0
    %616 = vmatpush1.msra.mxu0 0.0
    %617 = vmatprep.subr.mxu0 0.0
    %618 = vmatpush1.msra.mxu0 0.0
    %619 = vmatprep.subr.mxu0 0.0
    %620 = vmatpush1.msra.mxu0 0.0
    %621 = vmatprep.subr.mxu0 0.0
    %622 = vmatpush1.msra.mxu0 0.0
    %623 = vmatprep.subr.mxu0 0.0
    %624 = vmatpush1.msra.mxu0 0.0
    %625 = vmatprep.subr.mxu0 0.0
    %626 = vmatpush1.msra.mxu0 0.0
    %627 = vmatprep.subr.mxu0 0.0
    %628 = vmatpush1.msra.mxu0 0.0
    %629 = vmatprep.subr.mxu0 0.0
    %630 = vmatpush1.msra.mxu0 0.0
    %631 = vmatprep.subr.mxu0 0.0
    %632 = vmatpush1.msra.mxu0 0.0
    %633 = vmatprep.subr.mxu0 0.0
    %634 = vmatpush1.msra.mxu0 0.0
    %635 = vmatprep.subr.mxu0 0.0
    %636 = vmatpush1.msra.mxu0 0.0
    %637 = vmatprep.subr.mxu0 0.0
    %638 = vmatpush1.msra.mxu0 0.0
    %639 = vmatprep.mubr.f32.mxu0 0.0
    %640 = vmatmul.mubr.f32.gmra.mrb[0].mxu0 %v514
    %v641 = vpop.f32.mrb[0].mxu0
    %v642 = vadd.f32 %v573, %v641
    %v643 = vpop.f32.mrb[0].mxu0
    %644 = vmatprep.mubr.f32.mxu0 0.0
    %645 = vmatmul.mubr.f32.gmra.mrb[0].mxu0 %v515
    %v646 = vpop.f32.mrb[0].mxu0
    %v647 = vadd.f32 %v573, %v646
    %v648 = vpop.f32.mrb[0].mxu0
    %649 = vmatprep.mubr.f32.mxu0 0.0
    %650 = vmatmul.mubr.f32.gmra.mrb[0].mxu0 %v516
    %v651 = vpop.f32.mrb[0].mxu0
    %v652 = vadd.f32 %v573, %v651
    %v653 = vpop.f32.mrb[0].mxu0
    %654 = vmatprep.mubr.f32.mxu0 0.0
    %655 = vmatmul.mubr.f32.gmra.mrb[0].mxu0 %v517
    %v656 = vpop.f32.mrb[0].mxu0
    %v657 = vadd.f32 %v573, %v656
    %v658 = vpop.f32.mrb[0].mxu0
    %659 = vmatprep.mubr.f32.mxu0 0.0
    %660 = vmatmul.mubr.f32.gmra.mrb[0].mxu0 %v518
    %v661 = vpop.f32.mrb[0].mxu0
    %v662 = vadd.f32 %v573, %v661
    %v663 = vpop.f32.mrb[0].mxu0
    %664 = vmatprep.mubr.f32.mxu0 0.0
    %665 = vmatmul.mubr.f32.gmra.mrb[0].mxu0 %v519
    %v666 = vpop.f32.mrb[0].mxu0
    %v667 = vadd.f32 %v573, %v666
    %v668 = vpop.f32.mrb[0].mxu0
    %669 = vmatprep.mubr.f32.mxu0 0.0
    %670 = vmatmul.mubr.f32.gmra.mrb[0].mxu0 %v520
    %v671 = vpop.f32.mrb[0].mxu0
    %v672 = vadd.f32 %v573, %v671
    %v673 = vpop.f32.mrb[0].mxu0
    %674 = vmatprep.mubr.f32.mxu0 0.0
    %675 = vmatmul.mubr.f32.gmra.mrb[0].mxu0 %v521
    %v676 = vpop.f32.mrb[0].mxu0
    %v677 = vadd.f32 %v573, %v676
    %v678 = vpop.f32.mrb[0].mxu0
    %679 = vmatprep.mubr.f32.mxu0 0.0
    %680 = vmatmul.mubr.f32.gmra.mrb[0].mxu0 %v522
    %v681 = vpop.f32.mrb[0].mxu0
    %v682 = vadd.f32 %v573, %v681
    %v683 = vpop.f32.mrb[0].mxu0
    %684 = vmatprep.mubr.f32.mxu0 0.0
    %685 = vmatmul.mubr.f32.gmra.mrb[0].mxu0 %v523
    %v686 = vpop.f32.mrb[0].mxu0
    %v687 = vadd.f32 %v573, %v686
    %v688 = vpop.f32.mrb[0].mxu0
    %689 = vmatprep.mubr.f32.mxu0 0.0
    %690 = vmatmul.mubr.f32.gmra.mrb[0].mxu0 %v524
    %v691 = vpop.f32.mrb[0].mxu0
    %v692 = vadd.f32 %v573, %v691
    %v693 = vpop.f32.mrb[0].mxu0
    %694 = vmatprep.mubr.f32.mxu0 0.0
    %695 = vmatmul.mubr.f32.gmra.mrb[0].mxu0 %v525
    %v696 = vpop.f32.mrb[0].mxu0
    %v697 = vadd.f32 %v573, %v696
    %v698 = vpop.f32.mrb[0].mxu0
    %699 = vmatprep.mubr.f32.mxu0 0.0
    %700 = vmatmul.mubr.f32.gmra.mrb[0].mxu0 %v526
    %v701 = vpop.f32.mrb[0].mxu0
    %v702 = vadd.f32 %v573, %v701
    %v703 = vpop.f32.mrb[0].mxu0
    %704 = vmatprep.mubr.f32.mxu0 0.0
    %705 = vmatmul.mubr.f32.gmra.mrb[0].mxu0 %v527
    %v706 = vpop.f32.mrb[0].mxu0
    %v707 = vadd.f32 %v573, %v706
    %v708 = vpop.f32.mrb[0].mxu0
    %709 = vmatprep.mubr.f32.mxu0 0.0
    %710 = vmatmul.mubr.f32.gmra.mrb[0].mxu0 %v528
    %v711 = vpop.f32.mrb[0].mxu0
    %v712 = vadd.f32 %v573, %v711
    %v713 = vpop.f32.mrb[0].mxu0
    %714 = vmatprep.mubr.f32.mxu0 0.0
    %715 = vmatmul.mubr.f32.gmra.mrb[0].mxu0 %v529
    %v716 = vpop.f32.mrb[0].mxu0
    %v717 = vadd.f32 %v573, %v716
    %v718 = vpop.f32.mrb[0].mxu0
    %719 = vmatprep.mubr.f32.mxu0 0.0
    %720 = vmatmul.mubr.f32.gmra.mrb[0].mxu0 %v530
    %v721 = vpop.f32.mrb[0].mxu0
    %v722 = vadd.f32 %v573, %v721
    %v723 = vpop.f32.mrb[0].mxu0
    %724 = vmatprep.mubr.f32.mxu0 0.0
    %725 = vmatmul.mubr.f32.gmra.mrb[0].mxu0 %v531
    %v726 = vpop.f32.mrb[0].mxu0
    %v727 = vadd.f32 %v573, %v726
    %v728 = vpop.f32.mrb[0].mxu0
    %729 = vmatprep.mubr.f32.mxu0 0.0
    %730 = vmatmul.mubr.f32.gmra.mrb[0].mxu0 %v532
    %v731 = vpop.f32.mrb[0].mxu0
    %v732 = vadd.f32 %v573, %v731
    %v733 = vpop.f32.mrb[0].mxu0
    %734 = vmatprep.mubr.f32.mxu0 0.0
    %735 = vmatmul.mubr.f32.gmra.mrb[0].mxu0 %v533
    %v736 = vpop.f32.mrb[0].mxu0
    %v737 = vadd.f32 %v573, %v736
    %v738 = vpop.f32.mrb[0].mxu0
    %739 = vmatprep.mubr.f32.mxu0 0.0
    %740 = vmatmul.mubr.f32.gmra.mrb[0].mxu0 %v534
    %v741 = vpop.f32.mrb[0].mxu0
    %v742 = vadd.f32 %v573, %v741
    %v743 = vpop.f32.mrb[0].mxu0
    %744 = vmatprep.mubr.f32.mxu0 0.0
    %745 = vmatmul.mubr.f32.gmra.mrb[0].mxu0 %v535
    %v746 = vpop.f32.mrb[0].mxu0
    %v747 = vadd.f32 %v573, %v746
    %v748 = vpop.f32.mrb[0].mxu0
    %749 = vmatprep.mubr.f32.mxu0 0.0
    %750 = vmatmul.mubr.f32.gmra.mrb[0].mxu0 %v536
    %v751 = vpop.f32.mrb[0].mxu0
    %v752 = vadd.f32 %v573, %v751
    %v753 = vpop.f32.mrb[0].mxu0
    %754 = vmatprep.mubr.f32.mxu0 0.0
    %755 = vmatmul.mubr.f32.gmra.mrb[0].mxu0 %v537
    %v756 = vpop.f32.mrb[0].mxu0
    %v757 = vadd.f32 %v573, %v756
    %v758 = vpop.f32.mrb[0].mxu0
    %759 = vmatprep.mubr.f32.mxu0 0.0
    %760 = vmatmul.mubr.f32.gmra.mrb[0].mxu0 %v538
    %v761 = vpop.f32.mrb[0].mxu0
    %v762 = vadd.f32 %v573, %v761
    %v763 = vpop.f32.mrb[0].mxu0
    %764 = vmatprep.mubr.f32.mxu0 0.0
    %765 = vmatmul.mubr.f32.gmra.mrb[0].mxu0 %v539
    %v766 = vpop.f32.mrb[0].mxu0
    %v767 = vadd.f32 %v573, %v766
    %v768 = vpop.f32.mrb[0].mxu0
    %769 = vmatprep.mubr.f32.mxu0 0.0
    %770 = vmatmul.mubr.f32.gmra.mrb[0].mxu0 %v540
    %v771 = vpop.f32.mrb[0].mxu0
    %v772 = vadd.f32 %v573, %v771
    %v773 = vpop.f32.mrb[0].mxu0
    %774 = vmatprep.mubr.f32.mxu0 0.0
    %775 = vmatmul.mubr.f32.gmra.mrb[0].mxu0 %v541
    %v776 = vpop.f32.mrb[0].mxu0
    %v777 = vadd.f32 %v573, %v776
    %v778 = vpop.f32.mrb[0].mxu0
    %779 = vmatprep.mubr.f32.mxu0 0.0
    %780 = vmatmul.mubr.f32.gmra.mrb[0].mxu0 %v542
    %v781 = vpop.f32.mrb[0].mxu0
    %v782 = vadd.f32 %v573, %v781
    %v783 = vpop.f32.mrb[0].mxu0
    %784 = vmatprep.mubr.f32.mxu0 0.0
    %785 = vmatmul.mubr.f32.gmra.mrb[0].mxu0 %v543
    %v786 = vpop.f32.mrb[0].mxu0
    %v787 = vadd.f32 %v573, %v786
    %v788 = vpop.f32.mrb[0].mxu0
    %789 = vmatprep.mubr.f32.mxu0 0.0
    %790 = vmatmul.mubr.f32.gmra.mrb[0].mxu0 %v544
    %v791 = vpop.f32.mrb[0].mxu0
    %v792 = vadd.f32 %v573, %v791
    %v793 = vpop.f32.mrb[0].mxu0
    %794 = vmatprep.mubr.f32.mxu0 0.0
    %795 = vmatmul.mubr.f32.gmra.mrb[0].mxu0 %v545
    %v796 = vpop.f32.mrb[0].mxu0
    %v797 = vadd.f32 %v573, %v796
    %v798 = vpop.f32.mrb[0].mxu0
    %799 = vmatprep.mubr.f32.mxu0 0.0
    %800 = vmatmul.mubr.f32.gmra.mrb[0].mxu0 %v546
    %v801 = vpop.f32.mrb[0].mxu0
    %v802 = vadd.f32 %v573, %v801
    %v803 = vpop.f32.mrb[0].mxu0
    %804 = vmatprep.mubr.f32.mxu0 0.0
    %805 = vmatmul.mubr.f32.gmra.mrb[0].mxu0 %v547
    %v806 = vpop.f32.mrb[0].mxu0
    %v807 = vadd.f32 %v573, %v806
    %v808 = vpop.f32.mrb[0].mxu0
    %809 = vmatprep.mubr.f32.mxu0 0.0
    %810 = vmatmul.mubr.f32.gmra.mrb[0].mxu0 %v548
    %v811 = vpop.f32.mrb[0].mxu0
    %v812 = vadd.f32 %v573, %v811
    %v813 = vpop.f32.mrb[0].mxu0
    %814 = vmatprep.mubr.f32.mxu0 0.0
    %815 = vmatmul.mubr.f32.gmra.mrb[0].mxu0 %v549
    %v816 = vpop.f32.mrb[0].mxu0
    %v817 = vadd.f32 %v573, %v816
    %v818 = vpop.f32.mrb[0].mxu0
    %819 = vmatprep.mubr.f32.mxu0 0.0
    %820 = vmatmul.mubr.f32.gmra.mrb[0].mxu0 %v550
    %v821 = vpop.f32.mrb[0].mxu0
    %v822 = vadd.f32 %v573, %v821
    %v823 = vpop.f32.mrb[0].mxu0
    %824 = vmatprep.mubr.f32.mxu0 0.0
    %825 = vmatmul.mubr.f32.gmra.mrb[0].mxu0 %v551
    %v826 = vpop.f32.mrb[0].mxu0
    %v827 = vadd.f32 %v573, %v826
    %v828 = vpop.f32.mrb[0].mxu0
    %829 = vdwg.mxu0
    %v830 = vmax.f32 %v642, 0.0
    %v831 = vmax.f32 %v647, 0.0
    %v832 = vmax.f32 %v652, 0.0
    %v833 = vmax.f32 %v657, 0.0
    %v834 = vmax.f32 %v662, 0.0
    %v835 = vmax.f32 %v667, 0.0
    %v836 = vmax.f32 %v672, 0.0
    %v837 = vmax.f32 %v677, 0.0
    %v838 = vmax.f32 %v682, 0.0
    %v839 = vmax.f32 %v687, 0.0
    %v840 = vmax.f32 %v692, 0.0
    %v841 = vmax.f32 %v697, 0.0
    %v842 = vmax.f32 %v702, 0.0
    %v843 = vmax.f32 %v707, 0.0
    %v844 = vmax.f32 %v712, 0.0
    %v845 = vmax.f32 %v717, 0.0
    %v846 = vmax.f32 %v722, 0.0
    %v847 = vmax.f32 %v727, 0.0
    %v848 = vmax.f32 %v732, 0.0
    %v849 = vmax.f32 %v737, 0.0
    %v850 = vmax.f32 %v742, 0.0
    %v851 = vmax.f32 %v747, 0.0
    %v852 = vmax.f32 %v752, 0.0
    %v853 = vmax.f32 %v757, 0.0
    %v854 = vmax.f32 %v762, 0.0
    %v855 = vmax.f32 %v767, 0.0
    %v856 = vmax.f32 %v772, 0.0
    %v857 = vmax.f32 %v777, 0.0
    %v858 = vmax.f32 %v782, 0.0
    %v859 = vmax.f32 %v787, 0.0
    %v860 = vmax.f32 %v792, 0.0
    %v861 = vmax.f32 %v797, 0.0
    %v862 = vmax.f32 %v802, 0.0
    %v863 = vmax.f32 %v807, 0.0
    %v864 = vmax.f32 %v812, 0.0
    %v865 = vmax.f32 %v817, 0.0
    %v866 = vmax.f32 %v822, 0.0
    %v867 = vmax.f32 %v827, 0.0
    %v868 = vld [vmem:[%s5] sm:$0xff]
    %v869 = vld [vmem:[%s5 + $0x8] sm:$0xff]
    %v870 = vld [vmem:[%s5 + $0x10] sm:$0xff]
    %v871 = vld [vmem:[%s5 + $0x18] sm:$0xff]
    %v872 = vld [vmem:[%s5 + $0x20] sm:$0xff]
    %v873 = vld [vmem:[%s5 + $0x28] sm:$0xff]
    %v874 = vld [vmem:[%s5 + $0x30] sm:$0xff]
    %v875 = vld [vmem:[%s5 + $0x38] sm:$0xff]
    %v876 = vld [vmem:[%s5 + $0x40] sm:$0xff]
    %v877 = vld [vmem:[%s5 + $0x48] sm:$0xff]
    %v878 = vld [vmem:[%s5 + $0x50] sm:$0xff]
    %v879 = vld [vmem:[%s5 + $0x58] sm:$0xff]
    %v880 = vld [vmem:[%s5 + $0x60] sm:$0xff]
    %v881 = vld [vmem:[%s5 + $0x68] sm:$0xff]
    %v882 = vld [vmem:[%s5 + $0x70] sm:$0xff]
    %v883 = vld [vmem:[%s5 + $0x78] sm:$0xff]
    %v884 = vld [vmem:[%s6] sm:$0x1]
    %v886 = vlaneseq
    %v887 = vshrl.u32 %v886, 7
    %v888 = vsub.s32 0, %v887
    %v889 = vrot.slane %v884, %v888
    %891 = vmatprep.subr.mxu0 0.0
    %892 = vmatpush1.msra.mxu0 %v868
    %893 = vmatprep.subr.mxu0 0.0
    %894 = vmatpush1.msra.mxu0 %v869
    %895 = vmatprep.subr.mxu0 0.0
    %896 = vmatpush1.msra.mxu0 %v870
    %897 = vmatprep.subr.mxu0 0.0
    %898 = vmatpush1.msra.mxu0 %v871
    %899 = vmatprep.subr.mxu0 0.0
    %900 = vmatpush1.msra.mxu0 %v872
    %901 = vmatprep.subr.mxu0 0.0
    %902 = vmatpush1.msra.mxu0 %v873
    %903 = vmatprep.subr.mxu0 0.0
    %904 = vmatpush1.msra.mxu0 %v874
    %905 = vmatprep.subr.mxu0 0.0
    %906 = vmatpush1.msra.mxu0 %v875
    %907 = vmatprep.subr.mxu0 0.0
    %908 = vmatpush1.msra.mxu0 %v876
    %909 = vmatprep.subr.mxu0 0.0
    %910 = vmatpush1.msra.mxu0 %v877
    %911 = vmatprep.subr.mxu0 0.0
    %912 = vmatpush1.msra.mxu0 %v878
    %913 = vmatprep.subr.mxu0 0.0
    %914 = vmatpush1.msra.mxu0 %v879
    %915 = vmatprep.subr.mxu0 0.0
    %916 = vmatpush1.msra.mxu0 %v880
    %917 = vmatprep.subr.mxu0 0.0
    %918 = vmatpush1.msra.mxu0 %v881
    %919 = vmatprep.subr.mxu0 0.0
    %920 = vmatpush1.msra.mxu0 %v882
    %921 = vmatprep.subr.mxu0 0.0
    %922 = vmatpush1.msra.mxu0 %v883
    %923 = vmatprep.subr.mxu0 0.0
    %924 = vmatpush1.msra.mxu0 0.0
    %925 = vmatprep.subr.mxu0 0.0
    %926 = vmatpush1.msra.mxu0 0.0
    %927 = vmatprep.subr.mxu0 0.0
    %928 = vmatpush1.msra.mxu0 0.0
    %929 = vmatprep.subr.mxu0 0.0
    %930 = vmatpush1.msra.mxu0 0.0
    %931 = vmatprep.subr.mxu0 0.0
    %932 = vmatpush1.msra.mxu0 0.0
    %933 = vmatprep.subr.mxu0 0.0
    %934 = vmatpush1.msra.mxu0 0.0
    %935 = vmatprep.subr.mxu0 0.0
    %936 = vmatpush1.msra.mxu0 0.0
    %937 = vmatprep.subr.mxu0 0.0
    %938 = vmatpush1.msra.mxu0 0.0
    %939 = vmatprep.subr.mxu0 0.0
    %940 = vmatpush1.msra.mxu0 0.0
    %941 = vmatprep.subr.mxu0 0.0
    %942 = vmatpush1.msra.mxu0 0.0
    %943 = vmatprep.subr.mxu0 0.0
    %944 = vmatpush1.msra.mxu0 0.0
    %945 = vmatprep.subr.mxu0 0.0
    %946 = vmatpush1.msra.mxu0 0.0
    %947 = vmatprep.subr.mxu0 0.0
    %948 = vmatpush1.msra.mxu0 0.0
    %949 = vmatprep.subr.mxu0 0.0
    %950 = vmatpush1.msra.mxu0 0.0
    %951 = vmatprep.subr.mxu0 0.0
    %952 = vmatpush1.msra.mxu0 0.0
    %953 = vmatprep.subr.mxu0 0.0
    %954 = vmatpush1.msra.mxu0 0.0
    %955 = vmatprep.mubr.f32.mxu0 0.0
    %956 = vmatmul.mubr.f32.gmra.mrb[0].mxu0 %v830
    %v957 = vpop.f32.mrb[0].mxu0
    %v958 = vadd.f32 %v889, %v957
    %v959 = vpop.f32.mrb[0].mxu0
    %960 = vmatprep.mubr.f32.mxu0 0.0
    %961 = vmatmul.mubr.f32.gmra.mrb[0].mxu0 %v831
    %v962 = vpop.f32.mrb[0].mxu0
    %v963 = vadd.f32 %v889, %v962
    %v964 = vpop.f32.mrb[0].mxu0
    %965 = vmatprep.mubr.f32.mxu0 0.0
    %966 = vmatmul.mubr.f32.gmra.mrb[0].mxu0 %v832
    %v967 = vpop.f32.mrb[0].mxu0
    %v968 = vadd.f32 %v889, %v967
    %v969 = vpop.f32.mrb[0].mxu0
    %970 = vmatprep.mubr.f32.mxu0 0.0
    %971 = vmatmul.mubr.f32.gmra.mrb[0].mxu0 %v833
    %v972 = vpop.f32.mrb[0].mxu0
    %v973 = vadd.f32 %v889, %v972
    %v974 = vpop.f32.mrb[0].mxu0
    %975 = vmatprep.mubr.f32.mxu0 0.0
    %976 = vmatmul.mubr.f32.gmra.mrb[0].mxu0 %v834
    %v977 = vpop.f32.mrb[0].mxu0
    %v978 = vadd.f32 %v889, %v977
    %v979 = vpop.f32.mrb[0].mxu0
    %980 = vmatprep.mubr.f32.mxu0 0.0
    %981 = vmatmul.mubr.f32.gmra.mrb[0].mxu0 %v835
    %v982 = vpop.f32.mrb[0].mxu0
    %v983 = vadd.f32 %v889, %v982
    %v984 = vpop.f32.mrb[0].mxu0
    %985 = vmatprep.mubr.f32.mxu0 0.0
    %986 = vmatmul.mubr.f32.gmra.mrb[0].mxu0 %v836
    %v987 = vpop.f32.mrb[0].mxu0
    %v988 = vadd.f32 %v889, %v987
    %v989 = vpop.f32.mrb[0].mxu0
    %990 = vmatprep.mubr.f32.mxu0 0.0
    %991 = vmatmul.mubr.f32.gmra.mrb[0].mxu0 %v837
    %v992 = vpop.f32.mrb[0].mxu0
    %v993 = vadd.f32 %v889, %v992
    %v994 = vpop.f32.mrb[0].mxu0
    %995 = vmatprep.mubr.f32.mxu0 0.0
    %996 = vmatmul.mubr.f32.gmra.mrb[0].mxu0 %v838
    %v997 = vpop.f32.mrb[0].mxu0
    %v998 = vadd.f32 %v889, %v997
    %v999 = vpop.f32.mrb[0].mxu0
    %1000 = vmatprep.mubr.f32.mxu0 0.0
    %1001 = vmatmul.mubr.f32.gmra.mrb[0].mxu0 %v839
    %v1002 = vpop.f32.mrb[0].mxu0
    %v1003 = vadd.f32 %v889, %v1002
    %v1004 = vpop.f32.mrb[0].mxu0
    %1005 = vmatprep.mubr.f32.mxu0 0.0
    %1006 = vmatmul.mubr.f32.gmra.mrb[0].mxu0 %v840
    %v1007 = vpop.f32.mrb[0].mxu0
    %v1008 = vadd.f32 %v889, %v1007
    %v1009 = vpop.f32.mrb[0].mxu0
    %1010 = vmatprep.mubr.f32.mxu0 0.0
    %1011 = vmatmul.mubr.f32.gmra.mrb[0].mxu0 %v841
    %v1012 = vpop.f32.mrb[0].mxu0
    %v1013 = vadd.f32 %v889, %v1012
    %v1014 = vpop.f32.mrb[0].mxu0
    %1015 = vmatprep.mubr.f32.mxu0 0.0
    %1016 = vmatmul.mubr.f32.gmra.mrb[0].mxu0 %v842
    %v1017 = vpop.f32.mrb[0].mxu0
    %v1018 = vadd.f32 %v889, %v1017
    %v1019 = vpop.f32.mrb[0].mxu0
    %1020 = vmatprep.mubr.f32.mxu0 0.0
    %1021 = vmatmul.mubr.f32.gmra.mrb[0].mxu0 %v843
    %v1022 = vpop.f32.mrb[0].mxu0
    %v1023 = vadd.f32 %v889, %v1022
    %v1024 = vpop.f32.mrb[0].mxu0
    %1025 = vmatprep.mubr.f32.mxu0 0.0
    %1026 = vmatmul.mubr.f32.gmra.mrb[0].mxu0 %v844
    %v1027 = vpop.f32.mrb[0].mxu0
    %v1028 = vadd.f32 %v889, %v1027
    %v1029 = vpop.f32.mrb[0].mxu0
    %1030 = vmatprep.mubr.f32.mxu0 0.0
    %1031 = vmatmul.mubr.f32.gmra.mrb[0].mxu0 %v845
    %v1032 = vpop.f32.mrb[0].mxu0
    %v1033 = vadd.f32 %v889, %v1032
    %v1034 = vpop.f32.mrb[0].mxu0
    %1035 = vmatprep.mubr.f32.mxu0 0.0
    %1036 = vmatmul.mubr.f32.gmra.mrb[0].mxu0 %v846
    %v1037 = vpop.f32.mrb[0].mxu0
    %v1038 = vadd.f32 %v889, %v1037
    %v1039 = vpop.f32.mrb[0].mxu0
    %1040 = vmatprep.mubr.f32.mxu0 0.0
    %1041 = vmatmul.mubr.f32.gmra.mrb[0].mxu0 %v847
    %v1042 = vpop.f32.mrb[0].mxu0
    %v1043 = vadd.f32 %v889, %v1042
    %v1044 = vpop.f32.mrb[0].mxu0
    %1045 = vmatprep.mubr.f32.mxu0 0.0
    %1046 = vmatmul.mubr.f32.gmra.mrb[0].mxu0 %v848
    %v1047 = vpop.f32.mrb[0].mxu0
    %v1048 = vadd.f32 %v889, %v1047
    %v1049 = vpop.f32.mrb[0].mxu0
    %1050 = vmatprep.mubr.f32.mxu0 0.0
    %1051 = vmatmul.mubr.f32.gmra.mrb[0].mxu0 %v849
    %v1052 = vpop.f32.mrb[0].mxu0
    %v1053 = vadd.f32 %v889, %v1052
    %v1054 = vpop.f32.mrb[0].mxu0
    %1055 = vmatprep.mubr.f32.mxu0 0.0
    %1056 = vmatmul.mubr.f32.gmra.mrb[0].mxu0 %v850
    %v1057 = vpop.f32.mrb[0].mxu0
    %v1058 = vadd.f32 %v889, %v1057
    %v1059 = vpop.f32.mrb[0].mxu0
    %1060 = vmatprep.mubr.f32.mxu0 0.0
    %1061 = vmatmul.mubr.f32.gmra.mrb[0].mxu0 %v851
    %v1062 = vpop.f32.mrb[0].mxu0
    %v1063 = vadd.f32 %v889, %v1062
    %v1064 = vpop.f32.mrb[0].mxu0
    %1065 = vmatprep.mubr.f32.mxu0 0.0
    %1066 = vmatmul.mubr.f32.gmra.mrb[0].mxu0 %v852
    %v1067 = vpop.f32.mrb[0].mxu0
    %v1068 = vadd.f32 %v889, %v1067
    %v1069 = vpop.f32.mrb[0].mxu0
    %1070 = vmatprep.mubr.f32.mxu0 0.0
    %1071 = vmatmul.mubr.f32.gmra.mrb[0].mxu0 %v853
    %v1072 = vpop.f32.mrb[0].mxu0
    %v1073 = vadd.f32 %v889, %v1072
    %v1074 = vpop.f32.mrb[0].mxu0
    %1075 = vmatprep.mubr.f32.mxu0 0.0
    %1076 = vmatmul.mubr.f32.gmra.mrb[0].mxu0 %v854
    %v1077 = vpop.f32.mrb[0].mxu0
    %v1078 = vadd.f32 %v889, %v1077
    %v1079 = vpop.f32.mrb[0].mxu0
    %1080 = vmatprep.mubr.f32.mxu0 0.0
    %1081 = vmatmul.mubr.f32.gmra.mrb[0].mxu0 %v855
    %v1082 = vpop.f32.mrb[0].mxu0
    %v1083 = vadd.f32 %v889, %v1082
    %v1084 = vpop.f32.mrb[0].mxu0
    %1085 = vmatprep.mubr.f32.mxu0 0.0
    %1086 = vmatmul.mubr.f32.gmra.mrb[0].mxu0 %v856
    %v1087 = vpop.f32.mrb[0].mxu0
    %v1088 = vadd.f32 %v889, %v1087
    %v1089 = vpop.f32.mrb[0].mxu0
    %1090 = vmatprep.mubr.f32.mxu0 0.0
    %1091 = vmatmul.mubr.f32.gmra.mrb[0].mxu0 %v857
    %v1092 = vpop.f32.mrb[0].mxu0
    %v1093 = vadd.f32 %v889, %v1092
    %v1094 = vpop.f32.mrb[0].mxu0
    %1095 = vmatprep.mubr.f32.mxu0 0.0
    %1096 = vmatmul.mubr.f32.gmra.mrb[0].mxu0 %v858
    %v1097 = vpop.f32.mrb[0].mxu0
    %v1098 = vadd.f32 %v889, %v1097
    %v1099 = vpop.f32.mrb[0].mxu0
    %1100 = vmatprep.mubr.f32.mxu0 0.0
    %1101 = vmatmul.mubr.f32.gmra.mrb[0].mxu0 %v859
    %v1102 = vpop.f32.mrb[0].mxu0
    %v1103 = vadd.f32 %v889, %v1102
    %v1104 = vpop.f32.mrb[0].mxu0
    %1105 = vmatprep.mubr.f32.mxu0 0.0
    %1106 = vmatmul.mubr.f32.gmra.mrb[0].mxu0 %v860
    %v1107 = vpop.f32.mrb[0].mxu0
    %v1108 = vadd.f32 %v889, %v1107
    %v1109 = vpop.f32.mrb[0].mxu0
    %1110 = vmatprep.mubr.f32.mxu0 0.0
    %1111 = vmatmul.mubr.f32.gmra.mrb[0].mxu0 %v861
    %v1112 = vpop.f32.mrb[0].mxu0
    %v1113 = vadd.f32 %v889, %v1112
    %v1114 = vpop.f32.mrb[0].mxu0
    %1115 = vmatprep.mubr.f32.mxu0 0.0
    %1116 = vmatmul.mubr.f32.gmra.mrb[0].mxu0 %v862
    %v1117 = vpop.f32.mrb[0].mxu0
    %v1118 = vadd.f32 %v889, %v1117
    %v1119 = vpop.f32.mrb[0].mxu0
    %1120 = vmatprep.mubr.f32.mxu0 0.0
    %1121 = vmatmul.mubr.f32.gmra.mrb[0].mxu0 %v863
    %v1122 = vpop.f32.mrb[0].mxu0
    %v1123 = vadd.f32 %v889, %v1122
    %v1124 = vpop.f32.mrb[0].mxu0
    %1125 = vmatprep.mubr.f32.mxu0 0.0
    %1126 = vmatmul.mubr.f32.gmra.mrb[0].mxu0 %v864
    %v1127 = vpop.f32.mrb[0].mxu0
    %v1128 = vadd.f32 %v889, %v1127
    %v1129 = vpop.f32.mrb[0].mxu0
    %1130 = vmatprep.mubr.f32.mxu0 0.0
    %1131 = vmatmul.mubr.f32.gmra.mrb[0].mxu0 %v865
    %v1132 = vpop.f32.mrb[0].mxu0
    %v1133 = vadd.f32 %v889, %v1132
    %v1134 = vpop.f32.mrb[0].mxu0
    %1135 = vmatprep.mubr.f32.mxu0 0.0
    %1136 = vmatmul.mubr.f32.gmra.mrb[0].mxu0 %v866
    %v1137 = vpop.f32.mrb[0].mxu0
    %v1138 = vadd.f32 %v889, %v1137
    %v1139 = vpop.f32.mrb[0].mxu0
    %1140 = vmatprep.mubr.f32.mxu0 0.0
    %1141 = vmatmul.mubr.f32.gmra.mrb[0].mxu0 %v867
    %v1142 = vpop.f32.mrb[0].mxu0
    %v1143 = vadd.f32 %v889, %v1142
    %v1144 = vpop.f32.mrb[0].mxu0
    %1145 = vdwg.mxu0
    %v1146 = vmax.f32 %v958, 0.0
    %v1147 = vmax.f32 %v963, 0.0
    %v1148 = vmax.f32 %v968, 0.0
    %v1149 = vmax.f32 %v973, 0.0
    %v1150 = vmax.f32 %v978, 0.0
    %v1151 = vmax.f32 %v983, 0.0
    %v1152 = vmax.f32 %v988, 0.0
    %v1153 = vmax.f32 %v993, 0.0
    %v1154 = vmax.f32 %v998, 0.0
    %v1155 = vmax.f32 %v1003, 0.0
    %v1156 = vmax.f32 %v1008, 0.0
    %v1157 = vmax.f32 %v1013, 0.0
    %v1158 = vmax.f32 %v1018, 0.0
    %v1159 = vmax.f32 %v1023, 0.0
    %v1160 = vmax.f32 %v1028, 0.0
    %v1161 = vmax.f32 %v1033, 0.0
    %v1162 = vmax.f32 %v1038, 0.0
    %v1163 = vmax.f32 %v1043, 0.0
    %v1164 = vmax.f32 %v1048, 0.0
    %v1165 = vmax.f32 %v1053, 0.0
    %v1166 = vmax.f32 %v1058, 0.0
    %v1167 = vmax.f32 %v1063, 0.0
    %v1168 = vmax.f32 %v1068, 0.0
    %v1169 = vmax.f32 %v1073, 0.0
    %v1170 = vmax.f32 %v1078, 0.0
    %v1171 = vmax.f32 %v1083, 0.0
    %v1172 = vmax.f32 %v1088, 0.0
    %v1173 = vmax.f32 %v1093, 0.0
    %v1174 = vmax.f32 %v1098, 0.0
    %v1175 = vmax.f32 %v1103, 0.0
    %v1176 = vmax.f32 %v1108, 0.0
    %v1177 = vmax.f32 %v1113, 0.0
    %v1178 = vmax.f32 %v1118, 0.0
    %v1179 = vmax.f32 %v1123, 0.0
    %v1180 = vmax.f32 %v1128, 0.0
    %v1181 = vmax.f32 %v1133, 0.0
    %v1182 = vmax.f32 %v1138, 0.0
    %v1183 = vmax.f32 %v1143, 0.0
    %v1184 = vld [vmem:[%s7] sm:$0x1]
    %s1185 = sld [smem:[#allocation2]]
    %v1186 = vstv %s1185
    %1187 = vmatprep.subr.mxu0 0.0
    %1188 = vmatpush1.xpose.msra.mxu0 %v1146
    %1189 = vmatprep.subr.mxu0 0.0
    %1190 = vmatpush1.xpose.msra.mxu0 %v1147
    %1191 = vmatprep.subr.mxu0 0.0
    %1192 = vmatpush1.xpose.msra.mxu0 %v1148
    %1193 = vmatprep.subr.mxu0 0.0
    %1194 = vmatpush1.xpose.msra.mxu0 %v1149
    %1195 = vmatprep.subr.mxu0 0.0
    %1196 = vmatpush1.xpose.msra.mxu0 %v1150
    %1197 = vmatprep.subr.mxu0 0.0
    %1198 = vmatpush1.xpose.msra.mxu0 %v1151
    %1199 = vmatprep.subr.mxu0 0.0
    %1200 = vmatpush1.xpose.msra.mxu0 %v1152
    %1201 = vmatprep.subr.mxu0 0.0
    %1202 = vmatpush1.xpose.msra.mxu0 %v1153
    %1203 = vmatprep.subr.mxu0 0.0
    %1204 = vmatpush1.xpose.msra.mxu0 %v1154
    %1205 = vmatprep.subr.mxu0 0.0
    %1206 = vmatpush1.xpose.msra.mxu0 %v1155
    %1207 = vmatprep.subr.mxu0 0.0
    %1208 = vmatpush1.xpose.msra.mxu0 %v1156
    %1209 = vmatprep.subr.mxu0 0.0
    %1210 = vmatpush1.xpose.msra.mxu0 %v1157
    %1211 = vmatprep.subr.mxu0 0.0
    %1212 = vmatpush1.xpose.msra.mxu0 %v1158
    %1213 = vmatprep.subr.mxu0 0.0
    %1214 = vmatpush1.xpose.msra.mxu0 %v1159
    %1215 = vmatprep.subr.mxu0 0.0
    %1216 = vmatpush1.xpose.msra.mxu0 %v1160
    %1217 = vmatprep.subr.mxu0 0.0
    %1218 = vmatpush1.xpose.msra.mxu0 %v1161
    %1219 = vmatprep.subr.mxu0 0.0
    %1220 = vmatpush1.xpose.msra.mxu0 %v1162
    %1221 = vmatprep.subr.mxu0 0.0
    %1222 = vmatpush1.xpose.msra.mxu0 %v1163
    %1223 = vmatprep.subr.mxu0 0.0
    %1224 = vmatpush1.xpose.msra.mxu0 %v1164
    %1225 = vmatprep.subr.mxu0 0.0
    %1226 = vmatpush1.xpose.msra.mxu0 %v1165
    %1227 = vmatprep.subr.mxu0 0.0
    %1228 = vmatpush1.xpose.msra.mxu0 %v1166
    %1229 = vmatprep.subr.mxu0 0.0
    %1230 = vmatpush1.xpose.msra.mxu0 %v1167
    %1231 = vmatprep.subr.mxu0 0.0
    %1232 = vmatpush1.xpose.msra.mxu0 %v1168
    %1233 = vmatprep.subr.mxu0 0.0
    %1234 = vmatpush1.xpose.msra.mxu0 %v1169
    %1235 = vmatprep.subr.mxu0 0.0
    %1236 = vmatpush1.xpose.msra.mxu0 %v1170
    %1237 = vmatprep.subr.mxu0 0.0
    %1238 = vmatpush1.xpose.msra.mxu0 %v1171
    %1239 = vmatprep.subr.mxu0 0.0
    %1240 = vmatpush1.xpose.msra.mxu0 %v1172
    %1241 = vmatprep.subr.mxu0 0.0
    %1242 = vmatpush1.xpose.msra.mxu0 %v1173
    %1243 = vmatprep.subr.mxu0 0.0
    %1244 = vmatpush1.xpose.msra.mxu0 %v1174
    %1245 = vmatprep.subr.mxu0 0.0
    %1246 = vmatpush1.xpose.msra.mxu0 %v1175
    %1247 = vmatprep.subr.mxu0 0.0
    %1248 = vmatpush1.xpose.msra.mxu0 %v1176
    %1249 = vmatprep.subr.mxu0 0.0
    %1250 = vmatpush1.xpose.msra.mxu0 %v1177
    %1251 = vmatprep.mubr.f32.mxu0 0.0
    %1252 = vmatmul.mubr.f32.gmra.mrb[0].mxu0 %v1184
    %v1253 = vpop.f32.mrb[0].mxu0
    %v1254 = vadd.f32 %v1186, %v1253
    %v1255 = vpop.f32.mrb[0].mxu0
    %v1256 = vadd.f32 %v1186, %v1255
    %1257 = vdwg.mxu0
    %1258 = vmatprep.subr.mxu0 0.0
    %1259 = vmatpush1.xpose.msra.mxu0 %v1178
    %1260 = vmatprep.subr.mxu0 0.0
    %1261 = vmatpush1.xpose.msra.mxu0 %v1179
    %1262 = vmatprep.subr.mxu0 0.0
    %1263 = vmatpush1.xpose.msra.mxu0 %v1180
    %1264 = vmatprep.subr.mxu0 0.0
    %1265 = vmatpush1.xpose.msra.mxu0 %v1181
    %1266 = vmatprep.subr.mxu0 0.0
    %1267 = vmatpush1.xpose.msra.mxu0 %v1182
    %1268 = vmatprep.subr.mxu0 0.0
    %1269 = vmatpush1.xpose.msra.mxu0 %v1183
    %1270 = vmatprep.subr.mxu0 0.0
    %1271 = vmatpush1.xpose.msra.mxu0 0.0
    %1272 = vmatprep.subr.mxu0 0.0
    %1273 = vmatpush1.xpose.msra.mxu0 0.0
    %1274 = vmatprep.subr.mxu0 0.0
    %1275 = vmatpush1.xpose.msra.mxu0 0.0
    %1276 = vmatprep.subr.mxu0 0.0
    %1277 = vmatpush1.xpose.msra.mxu0 0.0
    %1278 = vmatprep.subr.mxu0 0.0
    %1279 = vmatpush1.xpose.msra.mxu0 0.0
    %1280 = vmatprep.subr.mxu0 0.0
    %1281 = vmatpush1.xpose.msra.mxu0 0.0
    %1282 = vmatprep.subr.mxu0 0.0
    %1283 = vmatpush1.xpose.msra.mxu0 0.0
    %1284 = vmatprep.subr.mxu0 0.0
    %1285 = vmatpush1.xpose.msra.mxu0 0.0
    %1286 = vmatprep.subr.mxu0 0.0
    %1287 = vmatpush1.xpose.msra.mxu0 0.0
    %1288 = vmatprep.subr.mxu0 0.0
    %1289 = vmatpush1.xpose.msra.mxu0 0.0
    %1290 = vmatprep.subr.mxu0 0.0
    %1291 = vmatpush1.xpose.msra.mxu0 0.0
    %1292 = vmatprep.subr.mxu0 0.0
    %1293 = vmatpush1.xpose.msra.mxu0 0.0
    %1294 = vmatprep.subr.mxu0 0.0
    %1295 = vmatpush1.xpose.msra.mxu0 0.0
    %1296 = vmatprep.subr.mxu0 0.0
    %1297 = vmatpush1.xpose.msra.mxu0 0.0
    %1298 = vmatprep.subr.mxu0 0.0
    %1299 = vmatpush1.xpose.msra.mxu0 0.0
    %1300 = vmatprep.subr.mxu0 0.0
    %1301 = vmatpush1.xpose.msra.mxu0 0.0
    %1302 = vmatprep.subr.mxu0 0.0
    %1303 = vmatpush1.xpose.msra.mxu0 0.0
    %1304 = vmatprep.subr.mxu0 0.0
    %1305 = vmatpush1.xpose.msra.mxu0 0.0
    %1306 = vmatprep.subr.mxu0 0.0
    %1307 = vmatpush1.xpose.msra.mxu0 0.0
    %1308 = vmatprep.subr.mxu0 0.0
    %1309 = vmatpush1.xpose.msra.mxu0 0.0
    %1310 = vmatprep.subr.mxu0 0.0
    %1311 = vmatpush1.xpose.msra.mxu0 0.0
    %1312 = vmatprep.subr.mxu0 0.0
    %1313 = vmatpush1.xpose.msra.mxu0 0.0
    %1314 = vmatprep.subr.mxu0 0.0
    %1315 = vmatpush1.xpose.msra.mxu0 0.0
    %1316 = vmatprep.subr.mxu0 0.0
    %1317 = vmatpush1.xpose.msra.mxu0 0.0
    %1318 = vmatprep.subr.mxu0 0.0
    %1319 = vmatpush1.xpose.msra.mxu0 0.0
    %1320 = vmatprep.subr.mxu0 0.0
    %1321 = vmatpush1.xpose.msra.mxu0 0.0
    %1322 = vmatprep.mubr.f32.mxu0 0.0
    %1323 = vmatmul.mubr.f32.gmra.mrb[0].mxu0 %v1184
    %v1324 = vpop.f32.mrb[0].mxu0
    %v1325 = vadd.f32 %v1186, %v1324
    %v1326 = vpop.f32.mrb[0].mxu0
    %1327 = vdwg.mxu0
    %v1331 = vcombine.low %v1254, %v1256
    %v1333 = vunpack.c.l.s4 1966171168
    %v1334 = vunpack.c.0.s8 %v1333
    %v1335 = vlaneseq
    %v1336 = vshrl.u32 %v1335, 7
    %v1337 = vsub.s32 %v1334, %v1336
    %v1338 = vrot.slane %v1331, %v1337
    %v1340 = vunpack.c.l.s4 1966171168
    %v1341 = vunpack.c.0.s8 %v1340
    %v1342 = vlaneseq
    %v1343 = vshrl.u32 %v1342, 7
    %v1344 = vsub.s32 %v1341, %v1343
    %v1345 = vrot.slane %v1325, %v1344
    %v1346 = vcombine.low %v1338, %v1345
    %v1348 = vunpack.c.l.s4 1966171168
    %v1349 = vunpack.c.0.s8 %v1348
    %v1350 = vlaneseq
    %v1351 = vshrl.u32 %v1350, 7
    %v1352 = vsub.s32 %v1349, %v1351
    %v1353 = vrot.slane %v1346, %v1352
    %v1355 = vlaneseq
    %vm1356 = vcmp.ge.s32.totalorder %v1355, 0
    %vm1357 = vcmp.lt.s32.totalorder %v1355, 304
    %vm1358 = vmand %vm1356, %vm1357
    %1359 = vst.msk [vmem:[#allocation3] sm:$0x7] %vm1358, %v1353
    // Predicated region
    $region38: #{tpu_custom_call.1} parent=1 // pred_check
      _
    $region39: #{tpu_custom_call.1} parent=1 // pred_check_branch
      %1361 = sbr.rel (0) target = $region41
    $region40: #{tpu_custom_call.1} parent=1 // pred_region
      %s1363 = ssub.s32 48, 48
      %1364 = vsyncadd [#allocation4], %s1363
      %s1366 = sshll.u32 [#allocation3], 4
      %s1367 = int_to_ptr.vmem [resolvable:$true] %s1366
      %1369 = dma.vmem_to_hbm [thread:$0]  %s1367, 48, %s9, [#allocation4]
    $region41: #{tpu_custom_call.1} parent=1 // pred_fallthru
      _
    // Predicated region
    $region42: #{tpu_custom_call.1} parent=1 // pred_check
      _
    $region43: #{tpu_custom_call.1} parent=1 // pred_check_branch
      %1371 = sbr.rel (0) target = $region45
    $region44: #{tpu_custom_call.1} parent=1 // pred_region
      %1372 = dma.done [#allocation4], 48
    $region45: #{tpu_custom_call.1} parent=1 // pred_fallthru
      _
    %1373 = vsyncpa [#allocation4], 1

</llo_original>
